<compile_context>
chip_gen: v5e
topology: v5e:2x2
jax: 0.10.0
libtpu: 0.0.40
codegen_flags: <defaults>
</compile_context>

<pallas_src>
import functools

import jax
import jax.numpy as jnp
from jax.experimental import pallas as pl
from jax.experimental.pallas import tpu as pltpu


def lstm_kernel(x_ref, wih_ref, whh_ref, b_ref, wfc_ref, bfc_ref, out_ref,
                *, T, B, Hp):
    # Hoisted input projection for all timesteps in one MXU matmul; the LSTM
    # bias (b_ih + b_hh) is folded in so no bias add remains on the recurrence.
    x_proj = (jnp.dot(x_ref[...], wih_ref[...],
                      preferred_element_type=jnp.float32)
              + b_ref[...])                                    # (T*B, 4*Hp)

    whh = whh_ref[...]                                         # (Hp, 4*Hp)

    h = jnp.zeros((B, Hp), jnp.float32)
    c = jnp.zeros((B, Hp), jnp.float32)

    # Fully unrolled static time loop (single kernel invocation, no grid).
    # Gate columns are ordered (i, f, o, g), each padded to Hp=128 lanes, so
    # all slices below are lane-tile aligned and the three sigmoids fuse into
    # one activation call. Padded lanes of c/h remain exactly zero.
    for t in range(T):
        gates = x_proj[t * B:(t + 1) * B, :] + jnp.dot(
            h, whh, preferred_element_type=jnp.float32)        # (B, 4*Hp)
        ifo = jax.nn.sigmoid(gates[:, :3 * Hp])
        g = jnp.tanh(gates[:, 3 * Hp:])
        i_g = ifo[:, 0 * Hp:1 * Hp]
        f_g = ifo[:, 1 * Hp:2 * Hp]
        o_g = ifo[:, 2 * Hp:3 * Hp]
        c = f_g * c + i_g * g
        h = o_g * jnp.tanh(c)

    # Final Linear on the last hidden state (padded rows of W_fc^T are zero).
    out_ref[...] = (jnp.dot(h, wfc_ref[...], preferred_element_type=jnp.float32)
                    + bfc_ref[0]).astype(out_ref.dtype)


def _prep_gate_matrix(w, H, Hp):
    """(4H, X) PyTorch gate-major (i,f,g,o) -> (X, 4*Hp) columns (i,f,o,g), lane-padded."""
    i, f, g, o = jnp.split(w, 4, axis=0)                       # each (H, X)
    pad_t = lambda blk: jnp.pad(blk.T, ((0, 0), (0, Hp - H)))  # (X, Hp)
    return jnp.concatenate([pad_t(i), pad_t(f), pad_t(o), pad_t(g)], axis=1)


def _prep_gate_bias(b, H, Hp):
    i, f, g, o = jnp.split(b, 4)
    pad = lambda v: jnp.pad(v, (0, Hp - H))
    return jnp.concatenate([pad(i), pad(f), pad(o), pad(g)]).reshape(1, 4 * Hp)


@jax.jit
def lstm_model_forward(x, w_ih, w_hh, b_ih, b_hh, w_fc, b_fc):
    """x: (B, T, D) float32 (PyTorch batch_first). Returns (B, O)."""
    B, T, D = x.shape
    H = w_hh.shape[1]
    O = w_fc.shape[0]
    Hp = 128                                    # pad hidden to one lane tile

    # Time-major, flattened to (T*B, D) so the hoisted projection is one matmul.
    x_flat = jnp.transpose(x, (1, 0, 2)).reshape(T * B, D)

    wih_k = _prep_gate_matrix(w_ih, H, Hp)                     # (D, 4*Hp)
    whh_k = jnp.pad(_prep_gate_matrix(w_hh, H, Hp),
                    ((0, Hp - H), (0, 0)))                     # (Hp, 4*Hp)
    bias_k = _prep_gate_bias(b_ih + b_hh, H, Hp)               # (1, 4*Hp)
    wfc_k = jnp.pad(w_fc.T, ((0, Hp - H), (0, 0)))             # (Hp, O)
    bfc_k = b_fc.reshape(O).astype(jnp.float32)                # (O,) scalar bias

    kernel = functools.partial(lstm_kernel, T=T, B=B, Hp=Hp)

    return pl.pallas_call(
        kernel,
        out_shape=jax.ShapeDtypeStruct((B, O), jnp.float32),
        in_specs=[
            pl.BlockSpec(memory_space=pltpu.MemorySpace.VMEM),  # x_flat
            pl.BlockSpec(memory_space=pltpu.MemorySpace.VMEM),  # W_ih^T (padded)
            pl.BlockSpec(memory_space=pltpu.MemorySpace.VMEM),  # W_hh^T (padded)
            pl.BlockSpec(memory_space=pltpu.MemorySpace.VMEM),  # fused LSTM bias
            pl.BlockSpec(memory_space=pltpu.MemorySpace.VMEM),  # W_fc^T (padded)
            pl.BlockSpec(memory_space=pltpu.MemorySpace.SMEM),  # b_fc scalar
        ],
        out_specs=pl.BlockSpec(memory_space=pltpu.MemorySpace.VMEM),
    )(x_flat, wih_k, whh_k, bias_k, wfc_k, bfc_k)


def lstm_model_reference(x, w_ih, w_hh, b_ih, b_hh, w_fc, b_fc):
    """Pure-JAX reference matching PyTorch nn.LSTM + nn.Linear semantics."""
    B, T, D = x.shape
    H = w_hh.shape[1]
    h = jnp.zeros((B, H), jnp.float32)
    c = jnp.zeros((B, H), jnp.float32)
    for t in range(T):
        gates = x[:, t, :] @ w_ih.T + h @ w_hh.T + b_ih + b_hh
        i = jax.nn.sigmoid(gates[:, 0 * H:1 * H])
        f = jax.nn.sigmoid(gates[:, 1 * H:2 * H])
        g = jnp.tanh(gates[:, 2 * H:3 * H])
        o = jax.nn.sigmoid(gates[:, 3 * H:4 * H])
        c = f * c + i * g
        h = o * jnp.tanh(c)
    return h @ w_fc.T + b_fc


if __name__ == "__main__":
    # Shapes consistent with the module: batch=2, seq=8, input_size=16,
    # hidden_size=50 (as in LSTM.py), output_size=1.
    B, T, D, H, O = 2, 8, 16, 50, 1

    key = jax.random.PRNGKey(0)
    kx, k1, k2, k3, k4, k5, k6 = jax.random.split(key, 7)
    scale = 1.0 / jnp.sqrt(jnp.float32(H))

    x = jax.random.normal(kx, (B, T, D), jnp.float32)
    w_ih = jax.random.uniform(k1, (4 * H, D), jnp.float32, -scale, scale)
    w_hh = jax.random.uniform(k2, (4 * H, H), jnp.float32, -scale, scale)
    b_ih = jax.random.uniform(k3, (4 * H,), jnp.float32, -scale, scale)
    b_hh = jax.random.uniform(k4, (4 * H,), jnp.float32, -scale, scale)
    w_fc = jax.random.uniform(k5, (O, H), jnp.float32, -scale, scale)
    b_fc = jax.random.uniform(k6, (O,), jnp.float32, -scale, scale)

    out = lstm_model_forward(x, w_ih, w_hh, b_ih, b_hh, w_fc, b_fc)
    out = jax.block_until_ready(out)

    ref = lstm_model_reference(x, w_ih, w_hh, b_ih, b_hh, w_fc, b_fc)
    assert out.shape == (B, O)
    assert jnp.allclose(out, ref, atol=1e-5, rtol=1e-5), (out, ref)

    print("KERNEL_OK")
</pallas_src>

<mosaic_0001>
module attributes {stable_mosaic.version = 11 : i64} {
  func.func @lstm_kernel(%arg0: memref<16x16xf32, #tpu.memory_space<vmem>>, %arg1: memref<16x512xf32, #tpu.memory_space<vmem>>, %arg2: memref<128x512xf32, #tpu.memory_space<vmem>>, %arg3: memref<1x512xf32, #tpu.memory_space<vmem>>, %arg4: memref<128x1xf32, #tpu.memory_space<vmem>>, %arg5: memref<1xf32, #tpu.memory_space<smem>>, %arg6: memref<2x1xf32, #tpu.memory_space<vmem>>) attributes {dimension_semantics = [], scalar_prefetch = 0 : i64, scratch_operands = 0 : i64, tpu.core_type = #tpu.core_type<tc>} {
    %c0 = arith.constant 0 : index
    %c0_0 = arith.constant 0 : index
    %0 = vector.load %arg0[%c0, %c0_0] : memref<16x16xf32, #tpu.memory_space<vmem>>, vector<16x16xf32>
    %c0_1 = arith.constant 0 : index
    %c0_2 = arith.constant 0 : index
    %1 = vector.load %arg1[%c0_1, %c0_2] : memref<16x512xf32, #tpu.memory_space<vmem>>, vector<16x512xf32>
    %cst = arith.constant dense<0.000000e+00> : vector<16x512xf32>
    %2 = tpu.matmul %0, %1, %cst {dimension_numbers = #tpu.dot_dimension_numbers<[1], [0], [0], [1], [0, 0, 1, 1], [], []>} : vector<16x16xf32>, vector<16x512xf32>, vector<16x512xf32> -> vector<16x512xf32>
    %c0_3 = arith.constant 0 : index
    %c0_4 = arith.constant 0 : index
    %3 = vector.load %arg3[%c0_3, %c0_4] : memref<1x512xf32, #tpu.memory_space<vmem>>, vector<1x512xf32>
    %4 = vector.broadcast %3 : vector<1x512xf32> to vector<16x512xf32>
    %5 = arith.addf %2, %4 : vector<16x512xf32>
    %c0_5 = arith.constant 0 : index
    %c0_6 = arith.constant 0 : index
    %6 = vector.load %arg2[%c0_5, %c0_6] : memref<128x512xf32, #tpu.memory_space<vmem>>, vector<128x512xf32>
    %cst_7 = arith.constant 0.000000e+00 : f32
    %7 = vector.broadcast %cst_7 : f32 to vector<2x128xf32>
    %cst_8 = arith.constant 0.000000e+00 : f32
    %8 = vector.broadcast %cst_8 : f32 to vector<2x128xf32>
    %9 = vector.extract_strided_slice %5 {offsets = [0, 0], sizes = [2, 512], strides = [1, 1]} : vector<16x512xf32> to vector<2x512xf32>
    %cst_9 = arith.constant dense<0.000000e+00> : vector<2x512xf32>
    %10 = tpu.matmul %7, %6, %cst_9 {dimension_numbers = #tpu.dot_dimension_numbers<[1], [0], [0], [1], [0, 0, 1, 1], [], []>} : vector<2x128xf32>, vector<128x512xf32>, vector<2x512xf32> -> vector<2x512xf32>
    %11 = arith.addf %9, %10 : vector<2x512xf32>
    %12 = vector.extract_strided_slice %11 {offsets = [0, 0], sizes = [2, 384], strides = [1, 1]} : vector<2x512xf32> to vector<2x384xf32>
    %13 = arith.negf %12 : vector<2x384xf32>
    %14 = math.exp %13 : vector<2x384xf32>
    %cst_10 = arith.constant 1.000000e+00 : f32
    %15 = vector.broadcast %cst_10 : f32 to vector<2x384xf32>
    %16 = arith.addf %15, %14 : vector<2x384xf32>
    %17 = arith.divf %15, %16 : vector<2x384xf32>
    %18 = vector.extract_strided_slice %11 {offsets = [0, 384], sizes = [2, 128], strides = [1, 1]} : vector<2x512xf32> to vector<2x128xf32>
    %19 = math.tanh %18 : vector<2x128xf32>
    %20 = vector.extract_strided_slice %17 {offsets = [0, 0], sizes = [2, 128], strides = [1, 1]} : vector<2x384xf32> to vector<2x128xf32>
    %21 = vector.extract_strided_slice %17 {offsets = [0, 128], sizes = [2, 128], strides = [1, 1]} : vector<2x384xf32> to vector<2x128xf32>
    %22 = vector.extract_strided_slice %17 {offsets = [0, 256], sizes = [2, 128], strides = [1, 1]} : vector<2x384xf32> to vector<2x128xf32>
    %23 = arith.mulf %21, %8 : vector<2x128xf32>
    %24 = arith.mulf %20, %19 : vector<2x128xf32>
    %25 = arith.addf %23, %24 : vector<2x128xf32>
    %26 = math.tanh %25 : vector<2x128xf32>
    %27 = arith.mulf %22, %26 : vector<2x128xf32>
    %28 = vector.extract_strided_slice %5 {offsets = [2, 0], sizes = [2, 512], strides = [1, 1]} : vector<16x512xf32> to vector<2x512xf32>
    %cst_11 = arith.constant dense<0.000000e+00> : vector<2x512xf32>
    %29 = tpu.matmul %27, %6, %cst_11 {dimension_numbers = #tpu.dot_dimension_numbers<[1], [0], [0], [1], [0, 0, 1, 1], [], []>} : vector<2x128xf32>, vector<128x512xf32>, vector<2x512xf32> -> vector<2x512xf32>
    %30 = arith.addf %28, %29 : vector<2x512xf32>
    %31 = vector.extract_strided_slice %30 {offsets = [0, 0], sizes = [2, 384], strides = [1, 1]} : vector<2x512xf32> to vector<2x384xf32>
    %32 = arith.negf %31 : vector<2x384xf32>
    %33 = math.exp %32 : vector<2x384xf32>
    %cst_12 = arith.constant 1.000000e+00 : f32
    %34 = vector.broadcast %cst_12 : f32 to vector<2x384xf32>
    %35 = arith.addf %34, %33 : vector<2x384xf32>
    %36 = arith.divf %34, %35 : vector<2x384xf32>
    %37 = vector.extract_strided_slice %30 {offsets = [0, 384], sizes = [2, 128], strides = [1, 1]} : vector<2x512xf32> to vector<2x128xf32>
    %38 = math.tanh %37 : vector<2x128xf32>
    %39 = vector.extract_strided_slice %36 {offsets = [0, 0], sizes = [2, 128], strides = [1, 1]} : vector<2x384xf32> to vector<2x128xf32>
    %40 = vector.extract_strided_slice %36 {offsets = [0, 128], sizes = [2, 128], strides = [1, 1]} : vector<2x384xf32> to vector<2x128xf32>
    %41 = vector.extract_strided_slice %36 {offsets = [0, 256], sizes = [2, 128], strides = [1, 1]} : vector<2x384xf32> to vector<2x128xf32>
    %42 = arith.mulf %40, %25 : vector<2x128xf32>
    %43 = arith.mulf %39, %38 : vector<2x128xf32>
    %44 = arith.addf %42, %43 : vector<2x128xf32>
    %45 = math.tanh %44 : vector<2x128xf32>
    %46 = arith.mulf %41, %45 : vector<2x128xf32>
    %47 = vector.extract_strided_slice %5 {offsets = [4, 0], sizes = [2, 512], strides = [1, 1]} : vector<16x512xf32> to vector<2x512xf32>
    %cst_13 = arith.constant dense<0.000000e+00> : vector<2x512xf32>
    %48 = tpu.matmul %46, %6, %cst_13 {dimension_numbers = #tpu.dot_dimension_numbers<[1], [0], [0], [1], [0, 0, 1, 1], [], []>} : vector<2x128xf32>, vector<128x512xf32>, vector<2x512xf32> -> vector<2x512xf32>
    %49 = arith.addf %47, %48 : vector<2x512xf32>
    %50 = vector.extract_strided_slice %49 {offsets = [0, 0], sizes = [2, 384], strides = [1, 1]} : vector<2x512xf32> to vector<2x384xf32>
    %51 = arith.negf %50 : vector<2x384xf32>
    %52 = math.exp %51 : vector<2x384xf32>
    %cst_14 = arith.constant 1.000000e+00 : f32
    %53 = vector.broadcast %cst_14 : f32 to vector<2x384xf32>
    %54 = arith.addf %53, %52 : vector<2x384xf32>
    %55 = arith.divf %53, %54 : vector<2x384xf32>
    %56 = vector.extract_strided_slice %49 {offsets = [0, 384], sizes = [2, 128], strides = [1, 1]} : vector<2x512xf32> to vector<2x128xf32>
    %57 = math.tanh %56 : vector<2x128xf32>
    %58 = vector.extract_strided_slice %55 {offsets = [0, 0], sizes = [2, 128], strides = [1, 1]} : vector<2x384xf32> to vector<2x128xf32>
    %59 = vector.extract_strided_slice %55 {offsets = [0, 128], sizes = [2, 128], strides = [1, 1]} : vector<2x384xf32> to vector<2x128xf32>
    %60 = vector.extract_strided_slice %55 {offsets = [0, 256], sizes = [2, 128], strides = [1, 1]} : vector<2x384xf32> to vector<2x128xf32>
    %61 = arith.mulf %59, %44 : vector<2x128xf32>
    %62 = arith.mulf %58, %57 : vector<2x128xf32>
    %63 = arith.addf %61, %62 : vector<2x128xf32>
    %64 = math.tanh %63 : vector<2x128xf32>
    %65 = arith.mulf %60, %64 : vector<2x128xf32>
    %66 = vector.extract_strided_slice %5 {offsets = [6, 0], sizes = [2, 512], strides = [1, 1]} : vector<16x512xf32> to vector<2x512xf32>
    %cst_15 = arith.constant dense<0.000000e+00> : vector<2x512xf32>
    %67 = tpu.matmul %65, %6, %cst_15 {dimension_numbers = #tpu.dot_dimension_numbers<[1], [0], [0], [1], [0, 0, 1, 1], [], []>} : vector<2x128xf32>, vector<128x512xf32>, vector<2x512xf32> -> vector<2x512xf32>
    %68 = arith.addf %66, %67 : vector<2x512xf32>
    %69 = vector.extract_strided_slice %68 {offsets = [0, 0], sizes = [2, 384], strides = [1, 1]} : vector<2x512xf32> to vector<2x384xf32>
    %70 = arith.negf %69 : vector<2x384xf32>
    %71 = math.exp %70 : vector<2x384xf32>
    %cst_16 = arith.constant 1.000000e+00 : f32
    %72 = vector.broadcast %cst_16 : f32 to vector<2x384xf32>
    %73 = arith.addf %72, %71 : vector<2x384xf32>
    %74 = arith.divf %72, %73 : vector<2x384xf32>
    %75 = vector.extract_strided_slice %68 {offsets = [0, 384], sizes = [2, 128], strides = [1, 1]} : vector<2x512xf32> to vector<2x128xf32>
    %76 = math.tanh %75 : vector<2x128xf32>
    %77 = vector.extract_strided_slice %74 {offsets = [0, 0], sizes = [2, 128], strides = [1, 1]} : vector<2x384xf32> to vector<2x128xf32>
    %78 = vector.extract_strided_slice %74 {offsets = [0, 128], sizes = [2, 128], strides = [1, 1]} : vector<2x384xf32> to vector<2x128xf32>
    %79 = vector.extract_strided_slice %74 {offsets = [0, 256], sizes = [2, 128], strides = [1, 1]} : vector<2x384xf32> to vector<2x128xf32>
    %80 = arith.mulf %78, %63 : vector<2x128xf32>
    %81 = arith.mulf %77, %76 : vector<2x128xf32>
    %82 = arith.addf %80, %81 : vector<2x128xf32>
    %83 = math.tanh %82 : vector<2x128xf32>
    %84 = arith.mulf %79, %83 : vector<2x128xf32>
    %85 = vector.extract_strided_slice %5 {offsets = [8, 0], sizes = [2, 512], strides = [1, 1]} : vector<16x512xf32> to vector<2x512xf32>
    %cst_17 = arith.constant dense<0.000000e+00> : vector<2x512xf32>
    %86 = tpu.matmul %84, %6, %cst_17 {dimension_numbers = #tpu.dot_dimension_numbers<[1], [0], [0], [1], [0, 0, 1, 1], [], []>} : vector<2x128xf32>, vector<128x512xf32>, vector<2x512xf32> -> vector<2x512xf32>
    %87 = arith.addf %85, %86 : vector<2x512xf32>
    %88 = vector.extract_strided_slice %87 {offsets = [0, 0], sizes = [2, 384], strides = [1, 1]} : vector<2x512xf32> to vector<2x384xf32>
    %89 = arith.negf %88 : vector<2x384xf32>
    %90 = math.exp %89 : vector<2x384xf32>
    %cst_18 = arith.constant 1.000000e+00 : f32
    %91 = vector.broadcast %cst_18 : f32 to vector<2x384xf32>
    %92 = arith.addf %91, %90 : vector<2x384xf32>
    %93 = arith.divf %91, %92 : vector<2x384xf32>
    %94 = vector.extract_strided_slice %87 {offsets = [0, 384], sizes = [2, 128], strides = [1, 1]} : vector<2x512xf32> to vector<2x128xf32>
    %95 = math.tanh %94 : vector<2x128xf32>
    %96 = vector.extract_strided_slice %93 {offsets = [0, 0], sizes = [2, 128], strides = [1, 1]} : vector<2x384xf32> to vector<2x128xf32>
    %97 = vector.extract_strided_slice %93 {offsets = [0, 128], sizes = [2, 128], strides = [1, 1]} : vector<2x384xf32> to vector<2x128xf32>
    %98 = vector.extract_strided_slice %93 {offsets = [0, 256], sizes = [2, 128], strides = [1, 1]} : vector<2x384xf32> to vector<2x128xf32>
    %99 = arith.mulf %97, %82 : vector<2x128xf32>
    %100 = arith.mulf %96, %95 : vector<2x128xf32>
    %101 = arith.addf %99, %100 : vector<2x128xf32>
    %102 = math.tanh %101 : vector<2x128xf32>
    %103 = arith.mulf %98, %102 : vector<2x128xf32>
    %104 = vector.extract_strided_slice %5 {offsets = [10, 0], sizes = [2, 512], strides = [1, 1]} : vector<16x512xf32> to vector<2x512xf32>
    %cst_19 = arith.constant dense<0.000000e+00> : vector<2x512xf32>
    %105 = tpu.matmul %103, %6, %cst_19 {dimension_numbers = #tpu.dot_dimension_numbers<[1], [0], [0], [1], [0, 0, 1, 1], [], []>} : vector<2x128xf32>, vector<128x512xf32>, vector<2x512xf32> -> vector<2x512xf32>
    %106 = arith.addf %104, %105 : vector<2x512xf32>
    %107 = vector.extract_strided_slice %106 {offsets = [0, 0], sizes = [2, 384], strides = [1, 1]} : vector<2x512xf32> to vector<2x384xf32>
    %108 = arith.negf %107 : vector<2x384xf32>
    %109 = math.exp %108 : vector<2x384xf32>
    %cst_20 = arith.constant 1.000000e+00 : f32
    %110 = vector.broadcast %cst_20 : f32 to vector<2x384xf32>
    %111 = arith.addf %110, %109 : vector<2x384xf32>
    %112 = arith.divf %110, %111 : vector<2x384xf32>
    %113 = vector.extract_strided_slice %106 {offsets = [0, 384], sizes = [2, 128], strides = [1, 1]} : vector<2x512xf32> to vector<2x128xf32>
    %114 = math.tanh %113 : vector<2x128xf32>
    %115 = vector.extract_strided_slice %112 {offsets = [0, 0], sizes = [2, 128], strides = [1, 1]} : vector<2x384xf32> to vector<2x128xf32>
    %116 = vector.extract_strided_slice %112 {offsets = [0, 128], sizes = [2, 128], strides = [1, 1]} : vector<2x384xf32> to vector<2x128xf32>
    %117 = vector.extract_strided_slice %112 {offsets = [0, 256], sizes = [2, 128], strides = [1, 1]} : vector<2x384xf32> to vector<2x128xf32>
    %118 = arith.mulf %116, %101 : vector<2x128xf32>
    %119 = arith.mulf %115, %114 : vector<2x128xf32>
    %120 = arith.addf %118, %119 : vector<2x128xf32>
    %121 = math.tanh %120 : vector<2x128xf32>
    %122 = arith.mulf %117, %121 : vector<2x128xf32>
    %123 = vector.extract_strided_slice %5 {offsets = [12, 0], sizes = [2, 512], strides = [1, 1]} : vector<16x512xf32> to vector<2x512xf32>
    %cst_21 = arith.constant dense<0.000000e+00> : vector<2x512xf32>
    %124 = tpu.matmul %122, %6, %cst_21 {dimension_numbers = #tpu.dot_dimension_numbers<[1], [0], [0], [1], [0, 0, 1, 1], [], []>} : vector<2x128xf32>, vector<128x512xf32>, vector<2x512xf32> -> vector<2x512xf32>
    %125 = arith.addf %123, %124 : vector<2x512xf32>
    %126 = vector.extract_strided_slice %125 {offsets = [0, 0], sizes = [2, 384], strides = [1, 1]} : vector<2x512xf32> to vector<2x384xf32>
    %127 = arith.negf %126 : vector<2x384xf32>
    %128 = math.exp %127 : vector<2x384xf32>
    %cst_22 = arith.constant 1.000000e+00 : f32
    %129 = vector.broadcast %cst_22 : f32 to vector<2x384xf32>
    %130 = arith.addf %129, %128 : vector<2x384xf32>
    %131 = arith.divf %129, %130 : vector<2x384xf32>
    %132 = vector.extract_strided_slice %125 {offsets = [0, 384], sizes = [2, 128], strides = [1, 1]} : vector<2x512xf32> to vector<2x128xf32>
    %133 = math.tanh %132 : vector<2x128xf32>
    %134 = vector.extract_strided_slice %131 {offsets = [0, 0], sizes = [2, 128], strides = [1, 1]} : vector<2x384xf32> to vector<2x128xf32>
    %135 = vector.extract_strided_slice %131 {offsets = [0, 128], sizes = [2, 128], strides = [1, 1]} : vector<2x384xf32> to vector<2x128xf32>
    %136 = vector.extract_strided_slice %131 {offsets = [0, 256], sizes = [2, 128], strides = [1, 1]} : vector<2x384xf32> to vector<2x128xf32>
    %137 = arith.mulf %135, %120 : vector<2x128xf32>
    %138 = arith.mulf %134, %133 : vector<2x128xf32>
    %139 = arith.addf %137, %138 : vector<2x128xf32>
    %140 = math.tanh %139 : vector<2x128xf32>
    %141 = arith.mulf %136, %140 : vector<2x128xf32>
    %142 = vector.extract_strided_slice %5 {offsets = [14, 0], sizes = [2, 512], strides = [1, 1]} : vector<16x512xf32> to vector<2x512xf32>
    %cst_23 = arith.constant dense<0.000000e+00> : vector<2x512xf32>
    %143 = tpu.matmul %141, %6, %cst_23 {dimension_numbers = #tpu.dot_dimension_numbers<[1], [0], [0], [1], [0, 0, 1, 1], [], []>} : vector<2x128xf32>, vector<128x512xf32>, vector<2x512xf32> -> vector<2x512xf32>
    %144 = arith.addf %142, %143 : vector<2x512xf32>
    %145 = vector.extract_strided_slice %144 {offsets = [0, 0], sizes = [2, 384], strides = [1, 1]} : vector<2x512xf32> to vector<2x384xf32>
    %146 = arith.negf %145 : vector<2x384xf32>
    %147 = math.exp %146 : vector<2x384xf32>
    %cst_24 = arith.constant 1.000000e+00 : f32
    %148 = vector.broadcast %cst_24 : f32 to vector<2x384xf32>
    %149 = arith.addf %148, %147 : vector<2x384xf32>
    %150 = arith.divf %148, %149 : vector<2x384xf32>
    %151 = vector.extract_strided_slice %144 {offsets = [0, 384], sizes = [2, 128], strides = [1, 1]} : vector<2x512xf32> to vector<2x128xf32>
    %152 = math.tanh %151 : vector<2x128xf32>
    %153 = vector.extract_strided_slice %150 {offsets = [0, 0], sizes = [2, 128], strides = [1, 1]} : vector<2x384xf32> to vector<2x128xf32>
    %154 = vector.extract_strided_slice %150 {offsets = [0, 128], sizes = [2, 128], strides = [1, 1]} : vector<2x384xf32> to vector<2x128xf32>
    %155 = vector.extract_strided_slice %150 {offsets = [0, 256], sizes = [2, 128], strides = [1, 1]} : vector<2x384xf32> to vector<2x128xf32>
    %156 = arith.mulf %154, %139 : vector<2x128xf32>
    %157 = arith.mulf %153, %152 : vector<2x128xf32>
    %158 = arith.addf %156, %157 : vector<2x128xf32>
    %159 = math.tanh %158 : vector<2x128xf32>
    %160 = arith.mulf %155, %159 : vector<2x128xf32>
    %c0_25 = arith.constant 0 : index
    %c0_26 = arith.constant 0 : index
    %161 = vector.load %arg4[%c0_25, %c0_26] : memref<128x1xf32, #tpu.memory_space<vmem>>, vector<128x1xf32>
    %cst_27 = arith.constant dense<0.000000e+00> : vector<2x1xf32>
    %162 = tpu.matmul %160, %161, %cst_27 {dimension_numbers = #tpu.dot_dimension_numbers<[1], [0], [0], [1], [0, 0, 1, 1], [], []>} : vector<2x128xf32>, vector<128x1xf32>, vector<2x1xf32> -> vector<2x1xf32>
    %c0_28 = arith.constant 0 : index
    %163 = memref.load %arg5[%c0_28] : memref<1xf32, #tpu.memory_space<smem>>
    %164 = vector.broadcast %163 : f32 to vector<2x1xf32>
    %165 = arith.addf %162, %164 : vector<2x1xf32>
    %c0_29 = arith.constant 0 : index
    %c0_30 = arith.constant 0 : index
    %166 = vector.load %arg6[%c0_29, %c0_30] : memref<2x1xf32, #tpu.memory_space<vmem>>, vector<2x1xf32>
    tpu.vector_store %arg6[%c0_29, %c0_30], %165 {strides = array<i32>} : memref<2x1xf32, #tpu.memory_space<vmem>>, vector<2x1xf32>,
    return
  }
}

</mosaic_0001>

<llo_original>
// kernel: lstm_model_forward.1
$region0: #{lstm_model_forward.1}
  #allocation0 [shape = 'u32[]', space=smem, size = 0x4, offset = 0x4, fixed_abs, tag = 'smem constant byte address 0x4 - core index']
  #allocation1 [shape = 'u32[72,128]{1,0:T(1,128)}', space=vmem, size = 0x9000, scoped, tag = 'internal scratch']
  #allocation2 [shape = 'f32[1]{0:T(128)S(6)}', space=smem, size = 0x200, scoped, tag = 'scoped memory for lstm_model_forward.1']
  %s0 = inlined_call_operand.vmem [shape: f32[16,16], index: 0, kind: input, shape index: {}]
  %s1 = inlined_call_operand.vmem [shape: f32[16,512], index: 1, kind: input, shape index: {}]
  %s2 = inlined_call_operand.vmem [shape: f32[128,512], index: 2, kind: input, shape index: {}]
  %s3 = inlined_call_operand.vmem [shape: f32[1,512], index: 3, kind: input, shape index: {}]
  %s4 = inlined_call_operand.vmem [shape: f32[128,1], index: 4, kind: input, shape index: {}]
  %s5 = inlined_call_operand.<no memory space> [shape: f32[1], index: 5, kind: input, shape index: {}]
  %s6 = inlined_call_operand.vmem [shape: f32[2,1], index: 6, kind: output, shape index: {}]
  %s7 = sld [smem:[#allocation0]]
  $region34: #{lstm_model_forward.1} parent=0
    _
  %s9 = ssub.s32 1, %s7
  %s10 = scalar_select 0, %s9, %s7
  %11 = sst [smem:[#allocation2]] %s5
  // Predicated region
  $region2: #{lstm_model_forward.1} parent=0 // pred_check
    _
  $region3: #{lstm_model_forward.1} parent=0 // pred_check_branch
    %13 = sbr.rel (0) target = $region5
  $region4: #{lstm_model_forward.1} parent=0 // pred_region
    _
  $region5: #{lstm_model_forward.1} parent=0 // pred_fallthru
    _
  // Predicated region
  $region6: #{lstm_model_forward.1} parent=0 // pred_check
    _
  $region7: #{lstm_model_forward.1} parent=0 // pred_check_branch
    %15 = sbr.rel (0) target = $region9
  $region8: #{lstm_model_forward.1} parent=0 // pred_region
    _
  $region9: #{lstm_model_forward.1} parent=0 // pred_fallthru
    _
  // Predicated region
  $region10: #{lstm_model_forward.1} parent=0 // pred_check
    _
  $region11: #{lstm_model_forward.1} parent=0 // pred_check_branch
    %17 = sbr.rel (0) target = $region13
  $region12: #{lstm_model_forward.1} parent=0 // pred_region
    _
  $region13: #{lstm_model_forward.1} parent=0 // pred_fallthru
    _
  // Predicated region
  $region14: #{lstm_model_forward.1} parent=0 // pred_check
    _
  $region15: #{lstm_model_forward.1} parent=0 // pred_check_branch
    %19 = sbr.rel (0) target = $region17
  $region16: #{lstm_model_forward.1} parent=0 // pred_region
    _
  $region17: #{lstm_model_forward.1} parent=0 // pred_fallthru
    _
  // Predicated region
  $region18: #{lstm_model_forward.1} parent=0 // pred_check
    _
  $region19: #{lstm_model_forward.1} parent=0 // pred_check_branch
    %21 = sbr.rel (0) target = $region21
  $region20: #{lstm_model_forward.1} parent=0 // pred_region
    _
  $region21: #{lstm_model_forward.1} parent=0 // pred_fallthru
    _
  // Predicated region
  $region22: #{lstm_model_forward.1} parent=0 // pred_check
    _
  $region23: #{lstm_model_forward.1} parent=0 // pred_check_branch
    %23 = sbr.rel (0) target = $region25
  $region24: #{lstm_model_forward.1} parent=0 // pred_region
    _
  $region25: #{lstm_model_forward.1} parent=0 // pred_fallthru
    _
  %v24 = vld [vmem:[%s0] sm:$0xff]
  %v25 = vld [vmem:[%s0 + $0x8] sm:$0xff]
  %v26 = vld [vmem:[%s1] sm:$0xff]
  %v27 = vld [vmem:[%s1 + $0x8] sm:$0xff]
  %v28 = vld [vmem:[%s1 + $0x10] sm:$0xff]
  %v29 = vld [vmem:[%s1 + $0x18] sm:$0xff]
  %v30 = vld [vmem:[%s1 + $0x20] sm:$0xff]
  %v31 = vld [vmem:[%s1 + $0x28] sm:$0xff]
  %v32 = vld [vmem:[%s1 + $0x30] sm:$0xff]
  %v33 = vld [vmem:[%s1 + $0x38] sm:$0xff]
  %v34 = vld [vmem:[%s3] sm:$0xf]
  %v36 = vperm.slane %v34, 0
  %v37 = vperm.slane %v34, 1
  %v38 = vperm.slane %v34, 2
  %v39 = vperm.slane %v34, 3
  %vm44 = vcmask 130048
  %v46 = vsel %vm44, %v24, 0
  %v49 = vsel %vm44, %v25, 0
  %51 = vmatpush.msra.mxu0 0.0
  %52 = vmatpush.msra.mxu0 0.0
  %53 = vmatpush.msra.mxu0 0.0
  %54 = vmatpush.msra.mxu0 0.0
  %55 = vmatpush.msra.mxu0 0.0
  %56 = vmatpush.msra.mxu0 0.0
  %57 = vmatpush.msra.mxu0 0.0
  %58 = vmatpush.msra.mxu0 0.0
  %59 = vmatpush.msra.mxu0 0.0
  %60 = vmatpush.msra.mxu0 0.0
  %61 = vmatpush.msra.mxu0 0.0
  %62 = vmatpush.msra.mxu0 0.0
  %63 = vmatpush.msra.mxu0 0.0
  %64 = vmatpush.msra.mxu0 0.0
  %65 = vmatpush.msra.mxu0 %v30
  %66 = vmatpush.msra.mxu0 %v26
  %67 = vmatmul.f32.gmra.mxu0 %v46
  %v68 = vpop.f32.mrf.mxu0
  %v69 = vadd.f32 %v36, %v68
  %70 = vmatmul.f32.gmra.mxu0 %v49
  %v71 = vpop.f32.mrf.mxu0
  %v72 = vadd.f32 %v36, %v71
  %73 = vdwg.mxu0
  %74 = vmatpush.msra.mxu0 0.0
  %75 = vmatpush.msra.mxu0 0.0
  %76 = vmatpush.msra.mxu0 0.0
  %77 = vmatpush.msra.mxu0 0.0
  %78 = vmatpush.msra.mxu0 0.0
  %79 = vmatpush.msra.mxu0 0.0
  %80 = vmatpush.msra.mxu0 0.0
  %81 = vmatpush.msra.mxu0 0.0
  %82 = vmatpush.msra.mxu0 0.0
  %83 = vmatpush.msra.mxu0 0.0
  %84 = vmatpush.msra.mxu0 0.0
  %85 = vmatpush.msra.mxu0 0.0
  %86 = vmatpush.msra.mxu0 0.0
  %87 = vmatpush.msra.mxu0 0.0
  %88 = vmatpush.msra.mxu0 %v31
  %89 = vmatpush.msra.mxu0 %v27
  %90 = vmatmul.f32.gmra.mxu0 %v46
  %v91 = vpop.f32.mrf.mxu0
  %v92 = vadd.f32 %v37, %v91
  %93 = vmatmul.f32.gmra.mxu0 %v49
  %v94 = vpop.f32.mrf.mxu0
  %v95 = vadd.f32 %v37, %v94
  %96 = vdwg.mxu0
  %97 = vmatpush.msra.mxu0 0.0
  %98 = vmatpush.msra.mxu0 0.0
  %99 = vmatpush.msra.mxu0 0.0
  %100 = vmatpush.msra.mxu0 0.0
  %101 = vmatpush.msra.mxu0 0.0
  %102 = vmatpush.msra.mxu0 0.0
  %103 = vmatpush.msra.mxu0 0.0
  %104 = vmatpush.msra.mxu0 0.0
  %105 = vmatpush.msra.mxu0 0.0
  %106 = vmatpush.msra.mxu0 0.0
  %107 = vmatpush.msra.mxu0 0.0
  %108 = vmatpush.msra.mxu0 0.0
  %109 = vmatpush.msra.mxu0 0.0
  %110 = vmatpush.msra.mxu0 0.0
  %111 = vmatpush.msra.mxu0 %v32
  %112 = vmatpush.msra.mxu0 %v28
  %113 = vmatmul.f32.gmra.mxu0 %v46
  %v114 = vpop.f32.mrf.mxu0
  %v115 = vadd.f32 %v38, %v114
  %116 = vmatmul.f32.gmra.mxu0 %v49
  %v117 = vpop.f32.mrf.mxu0
  %v118 = vadd.f32 %v38, %v117
  %119 = vdwg.mxu0
  %120 = vmatpush.msra.mxu0 0.0
  %121 = vmatpush.msra.mxu0 0.0
  %122 = vmatpush.msra.mxu0 0.0
  %123 = vmatpush.msra.mxu0 0.0
  %124 = vmatpush.msra.mxu0 0.0
  %125 = vmatpush.msra.mxu0 0.0
  %126 = vmatpush.msra.mxu0 0.0
  %127 = vmatpush.msra.mxu0 0.0
  %128 = vmatpush.msra.mxu0 0.0
  %129 = vmatpush.msra.mxu0 0.0
  %130 = vmatpush.msra.mxu0 0.0
  %131 = vmatpush.msra.mxu0 0.0
  %132 = vmatpush.msra.mxu0 0.0
  %133 = vmatpush.msra.mxu0 0.0
  %134 = vmatpush.msra.mxu0 %v33
  %135 = vmatpush.msra.mxu0 %v29
  %136 = vmatmul.f32.gmra.mxu0 %v46
  %v137 = vpop.f32.mrf.mxu0
  %v138 = vadd.f32 %v39, %v137
  %139 = vmatmul.f32.gmra.mxu0 %v49
  %v140 = vpop.f32.mrf.mxu0
  %v141 = vadd.f32 %v39, %v140
  %142 = vdwg.mxu0
  %v143 = vld [vmem:[%s2] sm:$0xff]
  %v144 = vld [vmem:[%s2 + $0x8] sm:$0xff]
  %v145 = vld [vmem:[%s2 + $0x10] sm:$0xff]
  %v146 = vld [vmem:[%s2 + $0x18] sm:$0xff]
  %v147 = vld [vmem:[%s2 + $0x20] sm:$0xff]
  %v148 = vld [vmem:[%s2 + $0x28] sm:$0xff]
  %v149 = vld [vmem:[%s2 + $0x30] sm:$0xff]
  %v150 = vld [vmem:[%s2 + $0x38] sm:$0xff]
  %v151 = vld [vmem:[%s2 + $0x40] sm:$0xff]
  %v152 = vld [vmem:[%s2 + $0x48] sm:$0xff]
  %v153 = vld [vmem:[%s2 + $0x50] sm:$0xff]
  %v154 = vld [vmem:[%s2 + $0x58] sm:$0xff]
  %v155 = vld [vmem:[%s2 + $0x60] sm:$0xff]
  %v156 = vld [vmem:[%s2 + $0x68] sm:$0xff]
  %v157 = vld [vmem:[%s2 + $0x70] sm:$0xff]
  %v158 = vld [vmem:[%s2 + $0x78] sm:$0xff]
  %v159 = vld [vmem:[%s2 + $0x80] sm:$0xff]
  %v160 = vld [vmem:[%s2 + $0x88] sm:$0xff]
  %v161 = vld [vmem:[%s2 + $0x90] sm:$0xff]
  %v162 = vld [vmem:[%s2 + $0x98] sm:$0xff]
  %v163 = vld [vmem:[%s2 + $0xa0] sm:$0xff]
  %v164 = vld [vmem:[%s2 + $0xa8] sm:$0xff]
  %v165 = vld [vmem:[%s2 + $0xb0] sm:$0xff]
  %v166 = vld [vmem:[%s2 + $0xb8] sm:$0xff]
  %v167 = vld [vmem:[%s2 + $0xc0] sm:$0xff]
  %v168 = vld [vmem:[%s2 + $0xc8] sm:$0xff]
  %v169 = vld [vmem:[%s2 + $0xd0] sm:$0xff]
  %v170 = vld [vmem:[%s2 + $0xd8] sm:$0xff]
  %v171 = vld [vmem:[%s2 + $0xe0] sm:$0xff]
  %v172 = vld [vmem:[%s2 + $0xe8] sm:$0xff]
  %v173 = vld [vmem:[%s2 + $0xf0] sm:$0xff]
  %v174 = vld [vmem:[%s2 + $0xf8] sm:$0xff]
  %v175 = vld [vmem:[%s2 + $0x100] sm:$0xff]
  %v176 = vld [vmem:[%s2 + $0x108] sm:$0xff]
  %v177 = vld [vmem:[%s2 + $0x110] sm:$0xff]
  %v178 = vld [vmem:[%s2 + $0x118] sm:$0xff]
  %v179 = vld [vmem:[%s2 + $0x120] sm:$0xff]
  %v180 = vld [vmem:[%s2 + $0x128] sm:$0xff]
  %v181 = vld [vmem:[%s2 + $0x130] sm:$0xff]
  %v182 = vld [vmem:[%s2 + $0x138] sm:$0xff]
  %v183 = vld [vmem:[%s2 + $0x140] sm:$0xff]
  %v184 = vld [vmem:[%s2 + $0x148] sm:$0xff]
  %v185 = vld [vmem:[%s2 + $0x150] sm:$0xff]
  %v186 = vld [vmem:[%s2 + $0x158] sm:$0xff]
  %v187 = vld [vmem:[%s2 + $0x160] sm:$0xff]
  %v188 = vld [vmem:[%s2 + $0x168] sm:$0xff]
  %v189 = vld [vmem:[%s2 + $0x170] sm:$0xff]
  %v190 = vld [vmem:[%s2 + $0x178] sm:$0xff]
  %v191 = vld [vmem:[%s2 + $0x180] sm:$0xff]
  %v192 = vld [vmem:[%s2 + $0x188] sm:$0xff]
  %v193 = vld [vmem:[%s2 + $0x190] sm:$0xff]
  %v194 = vld [vmem:[%s2 + $0x198] sm:$0xff]
  %v195 = vld [vmem:[%s2 + $0x1a0] sm:$0xff]
  %v196 = vld [vmem:[%s2 + $0x1a8] sm:$0xff]
  %v197 = vld [vmem:[%s2 + $0x1b0] sm:$0xff]
  %v198 = vld [vmem:[%s2 + $0x1b8] sm:$0xff]
  %v199 = vld [vmem:[%s2 + $0x1c0] sm:$0xff]
  %v200 = vld [vmem:[%s2 + $0x1c8] sm:$0xff]
  %v201 = vld [vmem:[%s2 + $0x1d0] sm:$0xff]
  %v202 = vld [vmem:[%s2 + $0x1d8] sm:$0xff]
  %v203 = vld [vmem:[%s2 + $0x1e0] sm:$0xff]
  %v204 = vld [vmem:[%s2 + $0x1e8] sm:$0xff]
  %v205 = vld [vmem:[%s2 + $0x1f0] sm:$0xff]
  %v206 = vld [vmem:[%s2 + $0x1f8] sm:$0xff]
  %207 = vmatpush.msra.mxu0 %v203
  %208 = vmatpush.msra.mxu0 %v199
  %209 = vmatpush.msra.mxu0 %v195
  %210 = vmatpush.msra.mxu0 %v191
  %211 = vmatpush.msra.mxu0 %v187
  %212 = vmatpush.msra.mxu0 %v183
  %213 = vmatpush.msra.mxu0 %v179
  %214 = vmatpush.msra.mxu0 %v175
  %215 = vmatpush.msra.mxu0 %v171
  %216 = vmatpush.msra.mxu0 %v167
  %217 = vmatpush.msra.mxu0 %v163
  %218 = vmatpush.msra.mxu0 %v159
  %219 = vmatpush.msra.mxu0 %v155
  %220 = vmatpush.msra.mxu0 %v151
  %221 = vmatpush.msra.mxu0 %v147
  %222 = vmatpush.msra.mxu0 %v143
  %223 = vmatmul.f32.gmra.mxu0 0.0
  %v224 = vpop.f32.mrf.mxu0
  %v225 = vadd.f32 0.0, %v224
  %226 = vdwg.mxu0
  %227 = vmatpush.msra.mxu0 %v204
  %228 = vmatpush.msra.mxu0 %v200
  %229 = vmatpush.msra.mxu0 %v196
  %230 = vmatpush.msra.mxu0 %v192
  %231 = vmatpush.msra.mxu0 %v188
  %232 = vmatpush.msra.mxu0 %v184
  %233 = vmatpush.msra.mxu0 %v180
  %234 = vmatpush.msra.mxu0 %v176
  %235 = vmatpush.msra.mxu0 %v172
  %236 = vmatpush.msra.mxu0 %v168
  %237 = vmatpush.msra.mxu0 %v164
  %238 = vmatpush.msra.mxu0 %v160
  %239 = vmatpush.msra.mxu0 %v156
  %240 = vmatpush.msra.mxu0 %v152
  %241 = vmatpush.msra.mxu0 %v148
  %242 = vmatpush.msra.mxu0 %v144
  %243 = vmatmul.f32.gmra.mxu0 0.0
  %v244 = vpop.f32.mrf.mxu0
  %v245 = vadd.f32 0.0, %v244
  %246 = vdwg.mxu0
  %247 = vmatpush.msra.mxu0 %v205
  %248 = vmatpush.msra.mxu0 %v201
  %249 = vmatpush.msra.mxu0 %v197
  %250 = vmatpush.msra.mxu0 %v193
  %251 = vmatpush.msra.mxu0 %v189
  %252 = vmatpush.msra.mxu0 %v185
  %253 = vmatpush.msra.mxu0 %v181
  %254 = vmatpush.msra.mxu0 %v177
  %255 = vmatpush.msra.mxu0 %v173
  %256 = vmatpush.msra.mxu0 %v169
  %257 = vmatpush.msra.mxu0 %v165
  %258 = vmatpush.msra.mxu0 %v161
  %259 = vmatpush.msra.mxu0 %v157
  %260 = vmatpush.msra.mxu0 %v153
  %261 = vmatpush.msra.mxu0 %v149
  %262 = vmatpush.msra.mxu0 %v145
  %263 = vmatmul.f32.gmra.mxu0 0.0
  %v264 = vpop.f32.mrf.mxu0
  %v265 = vadd.f32 0.0, %v264
  %266 = vdwg.mxu0
  %267 = vmatpush.msra.mxu0 %v206
  %268 = vmatpush.msra.mxu0 %v202
  %269 = vmatpush.msra.mxu0 %v198
  %270 = vmatpush.msra.mxu0 %v194
  %271 = vmatpush.msra.mxu0 %v190
  %272 = vmatpush.msra.mxu0 %v186
  %273 = vmatpush.msra.mxu0 %v182
  %274 = vmatpush.msra.mxu0 %v178
  %275 = vmatpush.msra.mxu0 %v174
  %276 = vmatpush.msra.mxu0 %v170
  %277 = vmatpush.msra.mxu0 %v166
  %278 = vmatpush.msra.mxu0 %v162
  %279 = vmatpush.msra.mxu0 %v158
  %280 = vmatpush.msra.mxu0 %v154
  %281 = vmatpush.msra.mxu0 %v150
  %282 = vmatpush.msra.mxu0 %v146
  %283 = vmatmul.f32.gmra.mxu0 0.0
  %v284 = vpop.f32.mrf.mxu0
  %v285 = vadd.f32 0.0, %v284
  %286 = vdwg.mxu0
  %v287 = vadd.f32 %v69, %v225
  %v288 = vadd.f32 %v92, %v245
  %v289 = vadd.f32 %v115, %v265
  %v290 = vadd.f32 %v138, %v285
  %v291 = vxor.u32 %v287, 2147483648
  %v292 = vxor.u32 %v288, 2147483648
  %v293 = vxor.u32 %v289, 2147483648
  %v294 = vmul.f32 %v291, 1.442695
  %v295 = vpow.pop %v294
  %v296 = vmul.f32 %v292, 1.442695
  %v297 = vpow.pop %v296
  %v298 = vmul.f32 %v293, 1.442695
  %v299 = vpow.pop %v298
  %v300 = vadd.f32 %v295, 1.0
  %v301 = vadd.f32 %v297, 1.0
  %v302 = vadd.f32 %v299, 1.0
  %v303 = vrcp.pop %v300
  %v304 = vmul.f32 %v300, %v303
  %v305 = vsub.f32 1.0, %v304
  %v306 = vmul.f32 %v303, %v305
  %v307 = vadd.f32 %v303, %v306
  %vm308 = vweird.f32 %v300
  %vm309 = vweird.f32 %v303
  %vm310 = vmor %vm308, %vm309
  %v311 = vsel %vm310, %v303, %v307
  %v312 = vand.u32 2147483647, %v300
  %vm313 = vcmp.eq.f32.partialorder %v312, 8.507059e+37
  %v314 = vand.u32 %v300, 2147483648
  %v315 = vor.u32 1.1754944e-38, %v314
  %v316 = vsel %vm313, %v315, %v311
  %v317 = vmul.f32 1.0, %v316
  %v318 = vrcp.pop %v301
  %v319 = vmul.f32 %v301, %v318
  %v320 = vsub.f32 1.0, %v319
  %v321 = vmul.f32 %v318, %v320
  %v322 = vadd.f32 %v318, %v321
  %vm323 = vweird.f32 %v301
  %vm324 = vweird.f32 %v318
  %vm325 = vmor %vm323, %vm324
  %v326 = vsel %vm325, %v318, %v322
  %v327 = vand.u32 2147483647, %v301
  %vm328 = vcmp.eq.f32.partialorder %v327, 8.507059e+37
  %v329 = vand.u32 %v301, 2147483648
  %v330 = vor.u32 1.1754944e-38, %v329
  %v331 = vsel %vm328, %v330, %v326
  %v332 = vmul.f32 1.0, %v331
  %v333 = vrcp.pop %v302
  %v334 = vmul.f32 %v302, %v333
  %v335 = vsub.f32 1.0, %v334
  %v336 = vmul.f32 %v333, %v335
  %v337 = vadd.f32 %v333, %v336
  %vm338 = vweird.f32 %v302
  %vm339 = vweird.f32 %v333
  %vm340 = vmor %vm338, %vm339
  %v341 = vsel %vm340, %v333, %v337
  %v342 = vand.u32 2147483647, %v302
  %vm343 = vcmp.eq.f32.partialorder %v342, 8.507059e+37
  %v344 = vand.u32 %v302, 2147483648
  %v345 = vor.u32 1.1754944e-38, %v344
  %v346 = vsel %vm343, %v345, %v341
  %v347 = vmul.f32 1.0, %v346
  %v348 = vtanh.pop %v290
  %v349 = vmul.f32 %v332, 0.0
  %v350 = vmul.f32 %v317, %v348
  %v351 = vadd.f32 %v349, %v350
  %v352 = vtanh.pop %v351
  %v353 = vmul.f32 %v347, %v352
  %354 = vmatpush.msra.mxu0 %v203
  %355 = vmatpush.msra.mxu0 %v199
  %356 = vmatpush.msra.mxu0 %v195
  %357 = vmatpush.msra.mxu0 %v191
  %358 = vmatpush.msra.mxu0 %v187
  %359 = vmatpush.msra.mxu0 %v183
  %360 = vmatpush.msra.mxu0 %v179
  %361 = vmatpush.msra.mxu0 %v175
  %362 = vmatpush.msra.mxu0 %v171
  %363 = vmatpush.msra.mxu0 %v167
  %364 = vmatpush.msra.mxu0 %v163
  %365 = vmatpush.msra.mxu0 %v159
  %366 = vmatpush.msra.mxu0 %v155
  %367 = vmatpush.msra.mxu0 %v151
  %368 = vmatpush.msra.mxu0 %v147
  %369 = vmatpush.msra.mxu0 %v143
  %370 = vmatmul.f32.gmra.mxu0 %v353
  %v371 = vpop.f32.mrf.mxu0
  %v372 = vadd.f32 0.0, %v371
  %373 = vdwg.mxu0
  %374 = vmatpush.msra.mxu0 %v204
  %375 = vmatpush.msra.mxu0 %v200
  %376 = vmatpush.msra.mxu0 %v196
  %377 = vmatpush.msra.mxu0 %v192
  %378 = vmatpush.msra.mxu0 %v188
  %379 = vmatpush.msra.mxu0 %v184
  %380 = vmatpush.msra.mxu0 %v180
  %381 = vmatpush.msra.mxu0 %v176
  %382 = vmatpush.msra.mxu0 %v172
  %383 = vmatpush.msra.mxu0 %v168
  %384 = vmatpush.msra.mxu0 %v164
  %385 = vmatpush.msra.mxu0 %v160
  %386 = vmatpush.msra.mxu0 %v156
  %387 = vmatpush.msra.mxu0 %v152
  %388 = vmatpush.msra.mxu0 %v148
  %389 = vmatpush.msra.mxu0 %v144
  %390 = vmatmul.f32.gmra.mxu0 %v353
  %v391 = vpop.f32.mrf.mxu0
  %v392 = vadd.f32 0.0, %v391
  %393 = vdwg.mxu0
  %394 = vmatpush.msra.mxu0 %v205
  %395 = vmatpush.msra.mxu0 %v201
  %396 = vmatpush.msra.mxu0 %v197
  %397 = vmatpush.msra.mxu0 %v193
  %398 = vmatpush.msra.mxu0 %v189
  %399 = vmatpush.msra.mxu0 %v185
  %400 = vmatpush.msra.mxu0 %v181
  %401 = vmatpush.msra.mxu0 %v177
  %402 = vmatpush.msra.mxu0 %v173
  %403 = vmatpush.msra.mxu0 %v169
  %404 = vmatpush.msra.mxu0 %v165
  %405 = vmatpush.msra.mxu0 %v161
  %406 = vmatpush.msra.mxu0 %v157
  %407 = vmatpush.msra.mxu0 %v153
  %408 = vmatpush.msra.mxu0 %v149
  %409 = vmatpush.msra.mxu0 %v145
  %410 = vmatmul.f32.gmra.mxu0 %v353
  %v411 = vpop.f32.mrf.mxu0
  %v412 = vadd.f32 0.0, %v411
  %413 = vdwg.mxu0
  %414 = vmatpush.msra.mxu0 %v206
  %415 = vmatpush.msra.mxu0 %v202
  %416 = vmatpush.msra.mxu0 %v198
  %417 = vmatpush.msra.mxu0 %v194
  %418 = vmatpush.msra.mxu0 %v190
  %419 = vmatpush.msra.mxu0 %v186
  %420 = vmatpush.msra.mxu0 %v182
  %421 = vmatpush.msra.mxu0 %v178
  %422 = vmatpush.msra.mxu0 %v174
  %423 = vmatpush.msra.mxu0 %v170
  %424 = vmatpush.msra.mxu0 %v166
  %425 = vmatpush.msra.mxu0 %v162
  %426 = vmatpush.msra.mxu0 %v158
  %427 = vmatpush.msra.mxu0 %v154
  %428 = vmatpush.msra.mxu0 %v150
  %429 = vmatpush.msra.mxu0 %v146
  %430 = vmatmul.f32.gmra.mxu0 %v353
  %v431 = vpop.f32.mrf.mxu0
  %v432 = vadd.f32 0.0, %v431
  %433 = vdwg.mxu0
  %v438 = vrot.slane %v372, 6
  %v439 = vrot.slane %v392, 6
  %v440 = vrot.slane %v412, 6
  %v441 = vrot.slane %v432, 6
  %v446 = vadd.f32 %v69, %v438
  %v447 = vadd.f32 %v92, %v439
  %v448 = vadd.f32 %v115, %v440
  %v449 = vadd.f32 %v138, %v441
  %v450 = vxor.u32 %v446, 2147483648
  %v451 = vxor.u32 %v447, 2147483648
  %v452 = vxor.u32 %v448, 2147483648
  %v453 = vmul.f32 %v450, 1.442695
  %v454 = vpow.pop %v453
  %v455 = vmul.f32 %v451, 1.442695
  %v456 = vpow.pop %v455
  %v457 = vmul.f32 %v452, 1.442695
  %v458 = vpow.pop %v457
  %v459 = vadd.f32 %v454, 1.0
  %v460 = vadd.f32 %v456, 1.0
  %v461 = vadd.f32 %v458, 1.0
  %v462 = vrcp.pop %v459
  %v463 = vmul.f32 %v459, %v462
  %v464 = vsub.f32 1.0, %v463
  %v465 = vmul.f32 %v462, %v464
  %v466 = vadd.f32 %v462, %v465
  %vm467 = vweird.f32 %v459
  %vm468 = vweird.f32 %v462
  %vm469 = vmor %vm467, %vm468
  %v470 = vsel %vm469, %v462, %v466
  %v471 = vand.u32 2147483647, %v459
  %vm472 = vcmp.eq.f32.partialorder %v471, 8.507059e+37
  %v473 = vand.u32 %v459, 2147483648
  %v474 = vor.u32 1.1754944e-38, %v473
  %v475 = vsel %vm472, %v474, %v470
  %v476 = vmul.f32 1.0, %v475
  %v477 = vrcp.pop %v460
  %v478 = vmul.f32 %v460, %v477
  %v479 = vsub.f32 1.0, %v478
  %v480 = vmul.f32 %v477, %v479
  %v481 = vadd.f32 %v477, %v480
  %vm482 = vweird.f32 %v460
  %vm483 = vweird.f32 %v477
  %vm484 = vmor %vm482, %vm483
  %v485 = vsel %vm484, %v477, %v481
  %v486 = vand.u32 2147483647, %v460
  %vm487 = vcmp.eq.f32.partialorder %v486, 8.507059e+37
  %v488 = vand.u32 %v460, 2147483648
  %v489 = vor.u32 1.1754944e-38, %v488
  %v490 = vsel %vm487, %v489, %v485
  %v491 = vmul.f32 1.0, %v490
  %v492 = vrcp.pop %v461
  %v493 = vmul.f32 %v461, %v492
  %v494 = vsub.f32 1.0, %v493
  %v495 = vmul.f32 %v492, %v494
  %v496 = vadd.f32 %v492, %v495
  %vm497 = vweird.f32 %v461
  %vm498 = vweird.f32 %v492
  %vm499 = vmor %vm497, %vm498
  %v500 = vsel %vm499, %v492, %v496
  %v501 = vand.u32 2147483647, %v461
  %vm502 = vcmp.eq.f32.partialorder %v501, 8.507059e+37
  %v503 = vand.u32 %v461, 2147483648
  %v504 = vor.u32 1.1754944e-38, %v503
  %v505 = vsel %vm502, %v504, %v500
  %v506 = vmul.f32 1.0, %v505
  %v507 = vtanh.pop %v449
  %v509 = vrot.slane %v351, 6
  %v511 = vmul.f32 %v491, %v509
  %v512 = vmul.f32 %v476, %v507
  %v513 = vadd.f32 %v511, %v512
  %v514 = vtanh.pop %v513
  %v515 = vmul.f32 %v506, %v514
  %v517 = vrot.slane %v515, 2
  %519 = vmatpush.msra.mxu0 %v203
  %520 = vmatpush.msra.mxu0 %v199
  %521 = vmatpush.msra.mxu0 %v195
  %522 = vmatpush.msra.mxu0 %v191
  %523 = vmatpush.msra.mxu0 %v187
  %524 = vmatpush.msra.mxu0 %v183
  %525 = vmatpush.msra.mxu0 %v179
  %526 = vmatpush.msra.mxu0 %v175
  %527 = vmatpush.msra.mxu0 %v171
  %528 = vmatpush.msra.mxu0 %v167
  %529 = vmatpush.msra.mxu0 %v163
  %530 = vmatpush.msra.mxu0 %v159
  %531 = vmatpush.msra.mxu0 %v155
  %532 = vmatpush.msra.mxu0 %v151
  %533 = vmatpush.msra.mxu0 %v147
  %534 = vmatpush.msra.mxu0 %v143
  %535 = vmatmul.f32.gmra.mxu0 %v517
  %v536 = vpop.f32.mrf.mxu0
  %v537 = vadd.f32 0.0, %v536
  %538 = vdwg.mxu0
  %539 = vmatpush.msra.mxu0 %v204
  %540 = vmatpush.msra.mxu0 %v200
  %541 = vmatpush.msra.mxu0 %v196
  %542 = vmatpush.msra.mxu0 %v192
  %543 = vmatpush.msra.mxu0 %v188
  %544 = vmatpush.msra.mxu0 %v184
  %545 = vmatpush.msra.mxu0 %v180
  %546 = vmatpush.msra.mxu0 %v176
  %547 = vmatpush.msra.mxu0 %v172
  %548 = vmatpush.msra.mxu0 %v168
  %549 = vmatpush.msra.mxu0 %v164
  %550 = vmatpush.msra.mxu0 %v160
  %551 = vmatpush.msra.mxu0 %v156
  %552 = vmatpush.msra.mxu0 %v152
  %553 = vmatpush.msra.mxu0 %v148
  %554 = vmatpush.msra.mxu0 %v144
  %555 = vmatmul.f32.gmra.mxu0 %v517
  %v556 = vpop.f32.mrf.mxu0
  %v557 = vadd.f32 0.0, %v556
  %558 = vdwg.mxu0
  %559 = vmatpush.msra.mxu0 %v205
  %560 = vmatpush.msra.mxu0 %v201
  %561 = vmatpush.msra.mxu0 %v197
  %562 = vmatpush.msra.mxu0 %v193
  %563 = vmatpush.msra.mxu0 %v189
  %564 = vmatpush.msra.mxu0 %v185
  %565 = vmatpush.msra.mxu0 %v181
  %566 = vmatpush.msra.mxu0 %v177
  %567 = vmatpush.msra.mxu0 %v173
  %568 = vmatpush.msra.mxu0 %v169
  %569 = vmatpush.msra.mxu0 %v165
  %570 = vmatpush.msra.mxu0 %v161
  %571 = vmatpush.msra.mxu0 %v157
  %572 = vmatpush.msra.mxu0 %v153
  %573 = vmatpush.msra.mxu0 %v149
  %574 = vmatpush.msra.mxu0 %v145
  %575 = vmatmul.f32.gmra.mxu0 %v517
  %v576 = vpop.f32.mrf.mxu0
  %v577 = vadd.f32 0.0, %v576
  %578 = vdwg.mxu0
  %579 = vmatpush.msra.mxu0 %v206
  %580 = vmatpush.msra.mxu0 %v202
  %581 = vmatpush.msra.mxu0 %v198
  %582 = vmatpush.msra.mxu0 %v194
  %583 = vmatpush.msra.mxu0 %v190
  %584 = vmatpush.msra.mxu0 %v186
  %585 = vmatpush.msra.mxu0 %v182
  %586 = vmatpush.msra.mxu0 %v178
  %587 = vmatpush.msra.mxu0 %v174
  %588 = vmatpush.msra.mxu0 %v170
  %589 = vmatpush.msra.mxu0 %v166
  %590 = vmatpush.msra.mxu0 %v162
  %591 = vmatpush.msra.mxu0 %v158
  %592 = vmatpush.msra.mxu0 %v154
  %593 = vmatpush.msra.mxu0 %v150
  %594 = vmatpush.msra.mxu0 %v146
  %595 = vmatmul.f32.gmra.mxu0 %v517
  %v596 = vpop.f32.mrf.mxu0
  %v597 = vadd.f32 0.0, %v596
  %598 = vdwg.mxu0
  %v603 = vrot.slane %v537, 4
  %v604 = vrot.slane %v557, 4
  %v605 = vrot.slane %v577, 4
  %v606 = vrot.slane %v597, 4
  %v611 = vadd.f32 %v69, %v603
  %v612 = vadd.f32 %v92, %v604
  %v613 = vadd.f32 %v115, %v605
  %v614 = vadd.f32 %v138, %v606
  %v615 = vxor.u32 %v611, 2147483648
  %v616 = vxor.u32 %v612, 2147483648
  %v617 = vxor.u32 %v613, 2147483648
  %v618 = vmul.f32 %v615, 1.442695
  %v619 = vpow.pop %v618
  %v620 = vmul.f32 %v616, 1.442695
  %v621 = vpow.pop %v620
  %v622 = vmul.f32 %v617, 1.442695
  %v623 = vpow.pop %v622
  %v624 = vadd.f32 %v619, 1.0
  %v625 = vadd.f32 %v621, 1.0
  %v626 = vadd.f32 %v623, 1.0
  %v627 = vrcp.pop %v624
  %v628 = vmul.f32 %v624, %v627
  %v629 = vsub.f32 1.0, %v628
  %v630 = vmul.f32 %v627, %v629
  %v631 = vadd.f32 %v627, %v630
  %vm632 = vweird.f32 %v624
  %vm633 = vweird.f32 %v627
  %vm634 = vmor %vm632, %vm633
  %v635 = vsel %vm634, %v627, %v631
  %v636 = vand.u32 2147483647, %v624
  %vm637 = vcmp.eq.f32.partialorder %v636, 8.507059e+37
  %v638 = vand.u32 %v624, 2147483648
  %v639 = vor.u32 1.1754944e-38, %v638
  %v640 = vsel %vm637, %v639, %v635
  %v641 = vmul.f32 1.0, %v640
  %v642 = vrcp.pop %v625
  %v643 = vmul.f32 %v625, %v642
  %v644 = vsub.f32 1.0, %v643
  %v645 = vmul.f32 %v642, %v644
  %v646 = vadd.f32 %v642, %v645
  %vm647 = vweird.f32 %v625
  %vm648 = vweird.f32 %v642
  %vm649 = vmor %vm647, %vm648
  %v650 = vsel %vm649, %v642, %v646
  %v651 = vand.u32 2147483647, %v625
  %vm652 = vcmp.eq.f32.partialorder %v651, 8.507059e+37
  %v653 = vand.u32 %v625, 2147483648
  %v654 = vor.u32 1.1754944e-38, %v653
  %v655 = vsel %vm652, %v654, %v650
  %v656 = vmul.f32 1.0, %v655
  %v657 = vrcp.pop %v626
  %v658 = vmul.f32 %v626, %v657
  %v659 = vsub.f32 1.0, %v658
  %v660 = vmul.f32 %v657, %v659
  %v661 = vadd.f32 %v657, %v660
  %vm662 = vweird.f32 %v626
  %vm663 = vweird.f32 %v657
  %vm664 = vmor %vm662, %vm663
  %v665 = vsel %vm664, %v657, %v661
  %v666 = vand.u32 2147483647, %v626
  %vm667 = vcmp.eq.f32.partialorder %v666, 8.507059e+37
  %v668 = vand.u32 %v626, 2147483648
  %v669 = vor.u32 1.1754944e-38, %v668
  %v670 = vsel %vm667, %v669, %v665
  %v671 = vmul.f32 1.0, %v670
  %v672 = vtanh.pop %v614
  %v674 = vrot.slane %v513, 6
  %v676 = vmul.f32 %v656, %v674
  %v677 = vmul.f32 %v641, %v672
  %v678 = vadd.f32 %v676, %v677
  %v679 = vtanh.pop %v678
  %v680 = vmul.f32 %v671, %v679
  %v682 = vrot.slane %v680, 4
  %684 = vmatpush.msra.mxu0 %v203
  %685 = vmatpush.msra.mxu0 %v199
  %686 = vmatpush.msra.mxu0 %v195
  %687 = vmatpush.msra.mxu0 %v191
  %688 = vmatpush.msra.mxu0 %v187
  %689 = vmatpush.msra.mxu0 %v183
  %690 = vmatpush.msra.mxu0 %v179
  %691 = vmatpush.msra.mxu0 %v175
  %692 = vmatpush.msra.mxu0 %v171
  %693 = vmatpush.msra.mxu0 %v167
  %694 = vmatpush.msra.mxu0 %v163
  %695 = vmatpush.msra.mxu0 %v159
  %696 = vmatpush.msra.mxu0 %v155
  %697 = vmatpush.msra.mxu0 %v151
  %698 = vmatpush.msra.mxu0 %v147
  %699 = vmatpush.msra.mxu0 %v143
  %700 = vmatmul.f32.gmra.mxu0 %v682
  %v701 = vpop.f32.mrf.mxu0
  %v702 = vadd.f32 0.0, %v701
  %703 = vdwg.mxu0
  %704 = vmatpush.msra.mxu0 %v204
  %705 = vmatpush.msra.mxu0 %v200
  %706 = vmatpush.msra.mxu0 %v196
  %707 = vmatpush.msra.mxu0 %v192
  %708 = vmatpush.msra.mxu0 %v188
  %709 = vmatpush.msra.mxu0 %v184
  %710 = vmatpush.msra.mxu0 %v180
  %711 = vmatpush.msra.mxu0 %v176
  %712 = vmatpush.msra.mxu0 %v172
  %713 = vmatpush.msra.mxu0 %v168
  %714 = vmatpush.msra.mxu0 %v164
  %715 = vmatpush.msra.mxu0 %v160
  %716 = vmatpush.msra.mxu0 %v156
  %717 = vmatpush.msra.mxu0 %v152
  %718 = vmatpush.msra.mxu0 %v148
  %719 = vmatpush.msra.mxu0 %v144
  %720 = vmatmul.f32.gmra.mxu0 %v682
  %v721 = vpop.f32.mrf.mxu0
  %v722 = vadd.f32 0.0, %v721
  %723 = vdwg.mxu0
  %724 = vmatpush.msra.mxu0 %v205
  %725 = vmatpush.msra.mxu0 %v201
  %726 = vmatpush.msra.mxu0 %v197
  %727 = vmatpush.msra.mxu0 %v193
  %728 = vmatpush.msra.mxu0 %v189
  %729 = vmatpush.msra.mxu0 %v185
  %730 = vmatpush.msra.mxu0 %v181
  %731 = vmatpush.msra.mxu0 %v177
  %732 = vmatpush.msra.mxu0 %v173
  %733 = vmatpush.msra.mxu0 %v169
  %734 = vmatpush.msra.mxu0 %v165
  %735 = vmatpush.msra.mxu0 %v161
  %736 = vmatpush.msra.mxu0 %v157
  %737 = vmatpush.msra.mxu0 %v153
  %738 = vmatpush.msra.mxu0 %v149
  %739 = vmatpush.msra.mxu0 %v145
  %740 = vmatmul.f32.gmra.mxu0 %v682
  %v741 = vpop.f32.mrf.mxu0
  %v742 = vadd.f32 0.0, %v741
  %743 = vdwg.mxu0
  %744 = vmatpush.msra.mxu0 %v206
  %745 = vmatpush.msra.mxu0 %v202
  %746 = vmatpush.msra.mxu0 %v198
  %747 = vmatpush.msra.mxu0 %v194
  %748 = vmatpush.msra.mxu0 %v190
  %749 = vmatpush.msra.mxu0 %v186
  %750 = vmatpush.msra.mxu0 %v182
  %751 = vmatpush.msra.mxu0 %v178
  %752 = vmatpush.msra.mxu0 %v174
  %753 = vmatpush.msra.mxu0 %v170
  %754 = vmatpush.msra.mxu0 %v166
  %755 = vmatpush.msra.mxu0 %v162
  %756 = vmatpush.msra.mxu0 %v158
  %757 = vmatpush.msra.mxu0 %v154
  %758 = vmatpush.msra.mxu0 %v150
  %759 = vmatpush.msra.mxu0 %v146
  %760 = vmatmul.f32.gmra.mxu0 %v682
  %v761 = vpop.f32.mrf.mxu0
  %v762 = vadd.f32 0.0, %v761
  %763 = vdwg.mxu0
  %v768 = vrot.slane %v702, 2
  %v769 = vrot.slane %v722, 2
  %v770 = vrot.slane %v742, 2
  %v771 = vrot.slane %v762, 2
  %v776 = vadd.f32 %v69, %v768
  %v777 = vadd.f32 %v92, %v769
  %v778 = vadd.f32 %v115, %v770
  %v779 = vadd.f32 %v138, %v771
  %v780 = vxor.u32 %v776, 2147483648
  %v781 = vxor.u32 %v777, 2147483648
  %v782 = vxor.u32 %v778, 2147483648
  %v783 = vmul.f32 %v780, 1.442695
  %v784 = vpow.pop %v783
  %v785 = vmul.f32 %v781, 1.442695
  %v786 = vpow.pop %v785
  %v787 = vmul.f32 %v782, 1.442695
  %v788 = vpow.pop %v787
  %v789 = vadd.f32 %v784, 1.0
  %v790 = vadd.f32 %v786, 1.0
  %v791 = vadd.f32 %v788, 1.0
  %v792 = vrcp.pop %v789
  %v793 = vmul.f32 %v789, %v792
  %v794 = vsub.f32 1.0, %v793
  %v795 = vmul.f32 %v792, %v794
  %v796 = vadd.f32 %v792, %v795
  %vm797 = vweird.f32 %v789
  %vm798 = vweird.f32 %v792
  %vm799 = vmor %vm797, %vm798
  %v800 = vsel %vm799, %v792, %v796
  %v801 = vand.u32 2147483647, %v789
  %vm802 = vcmp.eq.f32.partialorder %v801, 8.507059e+37
  %v803 = vand.u32 %v789, 2147483648
  %v804 = vor.u32 1.1754944e-38, %v803
  %v805 = vsel %vm802, %v804, %v800
  %v806 = vmul.f32 1.0, %v805
  %v807 = vrcp.pop %v790
  %v808 = vmul.f32 %v790, %v807
  %v809 = vsub.f32 1.0, %v808
  %v810 = vmul.f32 %v807, %v809
  %v811 = vadd.f32 %v807, %v810
  %vm812 = vweird.f32 %v790
  %vm813 = vweird.f32 %v807
  %vm814 = vmor %vm812, %vm813
  %v815 = vsel %vm814, %v807, %v811
  %v816 = vand.u32 2147483647, %v790
  %vm817 = vcmp.eq.f32.partialorder %v816, 8.507059e+37
  %v818 = vand.u32 %v790, 2147483648
  %v819 = vor.u32 1.1754944e-38, %v818
  %v820 = vsel %vm817, %v819, %v815
  %v821 = vmul.f32 1.0, %v820
  %v822 = vrcp.pop %v791
  %v823 = vmul.f32 %v791, %v822
  %v824 = vsub.f32 1.0, %v823
  %v825 = vmul.f32 %v822, %v824
  %v826 = vadd.f32 %v822, %v825
  %vm827 = vweird.f32 %v791
  %vm828 = vweird.f32 %v822
  %vm829 = vmor %vm827, %vm828
  %v830 = vsel %vm829, %v822, %v826
  %v831 = vand.u32 2147483647, %v791
  %vm832 = vcmp.eq.f32.partialorder %v831, 8.507059e+37
  %v833 = vand.u32 %v791, 2147483648
  %v834 = vor.u32 1.1754944e-38, %v833
  %v835 = vsel %vm832, %v834, %v830
  %v836 = vmul.f32 1.0, %v835
  %v837 = vtanh.pop %v779
  %v839 = vrot.slane %v678, 6
  %v841 = vmul.f32 %v821, %v839
  %v842 = vmul.f32 %v806, %v837
  %v843 = vadd.f32 %v841, %v842
  %v844 = vtanh.pop %v843
  %v845 = vmul.f32 %v836, %v844
  %v847 = vrot.slane %v845, 6
  %849 = vmatpush.msra.mxu0 %v203
  %850 = vmatpush.msra.mxu0 %v199
  %851 = vmatpush.msra.mxu0 %v195
  %852 = vmatpush.msra.mxu0 %v191
  %853 = vmatpush.msra.mxu0 %v187
  %854 = vmatpush.msra.mxu0 %v183
  %855 = vmatpush.msra.mxu0 %v179
  %856 = vmatpush.msra.mxu0 %v175
  %857 = vmatpush.msra.mxu0 %v171
  %858 = vmatpush.msra.mxu0 %v167
  %859 = vmatpush.msra.mxu0 %v163
  %860 = vmatpush.msra.mxu0 %v159
  %861 = vmatpush.msra.mxu0 %v155
  %862 = vmatpush.msra.mxu0 %v151
  %863 = vmatpush.msra.mxu0 %v147
  %864 = vmatpush.msra.mxu0 %v143
  %865 = vmatmul.f32.gmra.mxu0 %v847
  %v866 = vpop.f32.mrf.mxu0
  %v867 = vadd.f32 0.0, %v866
  %868 = vdwg.mxu0
  %869 = vmatpush.msra.mxu0 %v204
  %870 = vmatpush.msra.mxu0 %v200
  %871 = vmatpush.msra.mxu0 %v196
  %872 = vmatpush.msra.mxu0 %v192
  %873 = vmatpush.msra.mxu0 %v188
  %874 = vmatpush.msra.mxu0 %v184
  %875 = vmatpush.msra.mxu0 %v180
  %876 = vmatpush.msra.mxu0 %v176
  %877 = vmatpush.msra.mxu0 %v172
  %878 = vmatpush.msra.mxu0 %v168
  %879 = vmatpush.msra.mxu0 %v164
  %880 = vmatpush.msra.mxu0 %v160
  %881 = vmatpush.msra.mxu0 %v156
  %882 = vmatpush.msra.mxu0 %v152
  %883 = vmatpush.msra.mxu0 %v148
  %884 = vmatpush.msra.mxu0 %v144
  %885 = vmatmul.f32.gmra.mxu0 %v847
  %v886 = vpop.f32.mrf.mxu0
  %v887 = vadd.f32 0.0, %v886
  %888 = vdwg.mxu0
  %889 = vmatpush.msra.mxu0 %v205
  %890 = vmatpush.msra.mxu0 %v201
  %891 = vmatpush.msra.mxu0 %v197
  %892 = vmatpush.msra.mxu0 %v193
  %893 = vmatpush.msra.mxu0 %v189
  %894 = vmatpush.msra.mxu0 %v185
  %895 = vmatpush.msra.mxu0 %v181
  %896 = vmatpush.msra.mxu0 %v177
  %897 = vmatpush.msra.mxu0 %v173
  %898 = vmatpush.msra.mxu0 %v169
  %899 = vmatpush.msra.mxu0 %v165
  %900 = vmatpush.msra.mxu0 %v161
  %901 = vmatpush.msra.mxu0 %v157
  %902 = vmatpush.msra.mxu0 %v153
  %903 = vmatpush.msra.mxu0 %v149
  %904 = vmatpush.msra.mxu0 %v145
  %905 = vmatmul.f32.gmra.mxu0 %v847
  %v906 = vpop.f32.mrf.mxu0
  %v907 = vadd.f32 0.0, %v906
  %908 = vdwg.mxu0
  %909 = vmatpush.msra.mxu0 %v206
  %910 = vmatpush.msra.mxu0 %v202
  %911 = vmatpush.msra.mxu0 %v198
  %912 = vmatpush.msra.mxu0 %v194
  %913 = vmatpush.msra.mxu0 %v190
  %914 = vmatpush.msra.mxu0 %v186
  %915 = vmatpush.msra.mxu0 %v182
  %916 = vmatpush.msra.mxu0 %v178
  %917 = vmatpush.msra.mxu0 %v174
  %918 = vmatpush.msra.mxu0 %v170
  %919 = vmatpush.msra.mxu0 %v166
  %920 = vmatpush.msra.mxu0 %v162
  %921 = vmatpush.msra.mxu0 %v158
  %922 = vmatpush.msra.mxu0 %v154
  %923 = vmatpush.msra.mxu0 %v150
  %924 = vmatpush.msra.mxu0 %v146
  %925 = vmatmul.f32.gmra.mxu0 %v847
  %v926 = vpop.f32.mrf.mxu0
  %v927 = vadd.f32 0.0, %v926
  %928 = vdwg.mxu0
  %v929 = vadd.f32 %v72, %v867
  %v930 = vadd.f32 %v95, %v887
  %v931 = vadd.f32 %v118, %v907
  %v932 = vadd.f32 %v141, %v927
  %v933 = vxor.u32 %v929, 2147483648
  %v934 = vxor.u32 %v930, 2147483648
  %v935 = vxor.u32 %v931, 2147483648
  %v936 = vmul.f32 %v933, 1.442695
  %v937 = vpow.pop %v936
  %v938 = vmul.f32 %v934, 1.442695
  %v939 = vpow.pop %v938
  %v940 = vmul.f32 %v935, 1.442695
  %v941 = vpow.pop %v940
  %v942 = vadd.f32 %v937, 1.0
  %v943 = vadd.f32 %v939, 1.0
  %v944 = vadd.f32 %v941, 1.0
  %v945 = vrcp.pop %v942
  %v946 = vmul.f32 %v942, %v945
  %v947 = vsub.f32 1.0, %v946
  %v948 = vmul.f32 %v945, %v947
  %v949 = vadd.f32 %v945, %v948
  %vm950 = vweird.f32 %v942
  %vm951 = vweird.f32 %v945
  %vm952 = vmor %vm950, %vm951
  %v953 = vsel %vm952, %v945, %v949
  %v954 = vand.u32 2147483647, %v942
  %vm955 = vcmp.eq.f32.partialorder %v954, 8.507059e+37
  %v956 = vand.u32 %v942, 2147483648
  %v957 = vor.u32 1.1754944e-38, %v956
  %v958 = vsel %vm955, %v957, %v953
  %v959 = vmul.f32 1.0, %v958
  %v960 = vrcp.pop %v943
  %v961 = vmul.f32 %v943, %v960
  %v962 = vsub.f32 1.0, %v961
  %v963 = vmul.f32 %v960, %v962
  %v964 = vadd.f32 %v960, %v963
  %vm965 = vweird.f32 %v943
  %vm966 = vweird.f32 %v960
  %vm967 = vmor %vm965, %vm966
  %v968 = vsel %vm967, %v960, %v964
  %v969 = vand.u32 2147483647, %v943
  %vm970 = vcmp.eq.f32.partialorder %v969, 8.507059e+37
  %v971 = vand.u32 %v943, 2147483648
  %v972 = vor.u32 1.1754944e-38, %v971
  %v973 = vsel %vm970, %v972, %v968
  %v974 = vmul.f32 1.0, %v973
  %v975 = vrcp.pop %v944
  %v976 = vmul.f32 %v944, %v975
  %v977 = vsub.f32 1.0, %v976
  %v978 = vmul.f32 %v975, %v977
  %v979 = vadd.f32 %v975, %v978
  %vm980 = vweird.f32 %v944
  %vm981 = vweird.f32 %v975
  %vm982 = vmor %vm980, %vm981
  %v983 = vsel %vm982, %v975, %v979
  %v984 = vand.u32 2147483647, %v944
  %vm985 = vcmp.eq.f32.partialorder %v984, 8.507059e+37
  %v986 = vand.u32 %v944, 2147483648
  %v987 = vor.u32 1.1754944e-38, %v986
  %v988 = vsel %vm985, %v987, %v983
  %v989 = vmul.f32 1.0, %v988
  %v990 = vtanh.pop %v932
  %v992 = vrot.slane %v843, 6
  %v994 = vmul.f32 %v974, %v992
  %v995 = vmul.f32 %v959, %v990
  %v996 = vadd.f32 %v994, %v995
  %v997 = vtanh.pop %v996
  %v998 = vmul.f32 %v989, %v997
  %999 = vmatpush.msra.mxu0 %v203
  %1000 = vmatpush.msra.mxu0 %v199
  %1001 = vmatpush.msra.mxu0 %v195
  %1002 = vmatpush.msra.mxu0 %v191
  %1003 = vmatpush.msra.mxu0 %v187
  %1004 = vmatpush.msra.mxu0 %v183
  %1005 = vmatpush.msra.mxu0 %v179
  %1006 = vmatpush.msra.mxu0 %v175
  %1007 = vmatpush.msra.mxu0 %v171
  %1008 = vmatpush.msra.mxu0 %v167
  %1009 = vmatpush.msra.mxu0 %v163
  %1010 = vmatpush.msra.mxu0 %v159
  %1011 = vmatpush.msra.mxu0 %v155
  %1012 = vmatpush.msra.mxu0 %v151
  %1013 = vmatpush.msra.mxu0 %v147
  %1014 = vmatpush.msra.mxu0 %v143
  %1015 = vmatmul.f32.gmra.mxu0 %v998
  %v1016 = vpop.f32.mrf.mxu0
  %v1017 = vadd.f32 0.0, %v1016
  %1018 = vdwg.mxu0
  %1019 = vmatpush.msra.mxu0 %v204
  %1020 = vmatpush.msra.mxu0 %v200
  %1021 = vmatpush.msra.mxu0 %v196
  %1022 = vmatpush.msra.mxu0 %v192
  %1023 = vmatpush.msra.mxu0 %v188
  %1024 = vmatpush.msra.mxu0 %v184
  %1025 = vmatpush.msra.mxu0 %v180
  %1026 = vmatpush.msra.mxu0 %v176
  %1027 = vmatpush.msra.mxu0 %v172
  %1028 = vmatpush.msra.mxu0 %v168
  %1029 = vmatpush.msra.mxu0 %v164
  %1030 = vmatpush.msra.mxu0 %v160
  %1031 = vmatpush.msra.mxu0 %v156
  %1032 = vmatpush.msra.mxu0 %v152
  %1033 = vmatpush.msra.mxu0 %v148
  %1034 = vmatpush.msra.mxu0 %v144
  %1035 = vmatmul.f32.gmra.mxu0 %v998
  %v1036 = vpop.f32.mrf.mxu0
  %v1037 = vadd.f32 0.0, %v1036
  %1038 = vdwg.mxu0
  %1039 = vmatpush.msra.mxu0 %v205
  %1040 = vmatpush.msra.mxu0 %v201
  %1041 = vmatpush.msra.mxu0 %v197
  %1042 = vmatpush.msra.mxu0 %v193
  %1043 = vmatpush.msra.mxu0 %v189
  %1044 = vmatpush.msra.mxu0 %v185
  %1045 = vmatpush.msra.mxu0 %v181
  %1046 = vmatpush.msra.mxu0 %v177
  %1047 = vmatpush.msra.mxu0 %v173
  %1048 = vmatpush.msra.mxu0 %v169
  %1049 = vmatpush.msra.mxu0 %v165
  %1050 = vmatpush.msra.mxu0 %v161
  %1051 = vmatpush.msra.mxu0 %v157
  %1052 = vmatpush.msra.mxu0 %v153
  %1053 = vmatpush.msra.mxu0 %v149
  %1054 = vmatpush.msra.mxu0 %v145
  %1055 = vmatmul.f32.gmra.mxu0 %v998
  %v1056 = vpop.f32.mrf.mxu0
  %v1057 = vadd.f32 0.0, %v1056
  %1058 = vdwg.mxu0
  %1059 = vmatpush.msra.mxu0 %v206
  %1060 = vmatpush.msra.mxu0 %v202
  %1061 = vmatpush.msra.mxu0 %v198
  %1062 = vmatpush.msra.mxu0 %v194
  %1063 = vmatpush.msra.mxu0 %v190
  %1064 = vmatpush.msra.mxu0 %v186
  %1065 = vmatpush.msra.mxu0 %v182
  %1066 = vmatpush.msra.mxu0 %v178
  %1067 = vmatpush.msra.mxu0 %v174
  %1068 = vmatpush.msra.mxu0 %v170
  %1069 = vmatpush.msra.mxu0 %v166
  %1070 = vmatpush.msra.mxu0 %v162
  %1071 = vmatpush.msra.mxu0 %v158
  %1072 = vmatpush.msra.mxu0 %v154
  %1073 = vmatpush.msra.mxu0 %v150
  %1074 = vmatpush.msra.mxu0 %v146
  %1075 = vmatmul.f32.gmra.mxu0 %v998
  %v1076 = vpop.f32.mrf.mxu0
  %v1077 = vadd.f32 0.0, %v1076
  %1078 = vdwg.mxu0
  %v1083 = vrot.slane %v1017, 6
  %v1084 = vrot.slane %v1037, 6
  %v1085 = vrot.slane %v1057, 6
  %v1086 = vrot.slane %v1077, 6
  %v1091 = vadd.f32 %v72, %v1083
  %v1092 = vadd.f32 %v95, %v1084
  %v1093 = vadd.f32 %v118, %v1085
  %v1094 = vadd.f32 %v141, %v1086
  %v1095 = vxor.u32 %v1091, 2147483648
  %v1096 = vxor.u32 %v1092, 2147483648
  %v1097 = vxor.u32 %v1093, 2147483648
  %v1098 = vmul.f32 %v1095, 1.442695
  %v1099 = vpow.pop %v1098
  %v1100 = vmul.f32 %v1096, 1.442695
  %v1101 = vpow.pop %v1100
  %v1102 = vmul.f32 %v1097, 1.442695
  %v1103 = vpow.pop %v1102
  %v1104 = vadd.f32 %v1099, 1.0
  %v1105 = vadd.f32 %v1101, 1.0
  %v1106 = vadd.f32 %v1103, 1.0
  %v1107 = vrcp.pop %v1104
  %v1108 = vmul.f32 %v1104, %v1107
  %v1109 = vsub.f32 1.0, %v1108
  %v1110 = vmul.f32 %v1107, %v1109
  %v1111 = vadd.f32 %v1107, %v1110
  %vm1112 = vweird.f32 %v1104
  %vm1113 = vweird.f32 %v1107
  %vm1114 = vmor %vm1112, %vm1113
  %v1115 = vsel %vm1114, %v1107, %v1111
  %v1116 = vand.u32 2147483647, %v1104
  %vm1117 = vcmp.eq.f32.partialorder %v1116, 8.507059e+37
  %v1118 = vand.u32 %v1104, 2147483648
  %v1119 = vor.u32 1.1754944e-38, %v1118
  %v1120 = vsel %vm1117, %v1119, %v1115
  %v1121 = vmul.f32 1.0, %v1120
  %v1122 = vrcp.pop %v1105
  %v1123 = vmul.f32 %v1105, %v1122
  %v1124 = vsub.f32 1.0, %v1123
  %v1125 = vmul.f32 %v1122, %v1124
  %v1126 = vadd.f32 %v1122, %v1125
  %vm1127 = vweird.f32 %v1105
  %vm1128 = vweird.f32 %v1122
  %vm1129 = vmor %vm1127, %vm1128
  %v1130 = vsel %vm1129, %v1122, %v1126
  %v1131 = vand.u32 2147483647, %v1105
  %vm1132 = vcmp.eq.f32.partialorder %v1131, 8.507059e+37
  %v1133 = vand.u32 %v1105, 2147483648
  %v1134 = vor.u32 1.1754944e-38, %v1133
  %v1135 = vsel %vm1132, %v1134, %v1130
  %v1136 = vmul.f32 1.0, %v1135
  %v1137 = vrcp.pop %v1106
  %v1138 = vmul.f32 %v1106, %v1137
  %v1139 = vsub.f32 1.0, %v1138
  %v1140 = vmul.f32 %v1137, %v1139
  %v1141 = vadd.f32 %v1137, %v1140
  %vm1142 = vweird.f32 %v1106
  %vm1143 = vweird.f32 %v1137
  %vm1144 = vmor %vm1142, %vm1143
  %v1145 = vsel %vm1144, %v1137, %v1141
  %v1146 = vand.u32 2147483647, %v1106
  %vm1147 = vcmp.eq.f32.partialorder %v1146, 8.507059e+37
  %v1148 = vand.u32 %v1106, 2147483648
  %v1149 = vor.u32 1.1754944e-38, %v1148
  %v1150 = vsel %vm1147, %v1149, %v1145
  %v1151 = vmul.f32 1.0, %v1150
  %v1152 = vtanh.pop %v1094
  %v1154 = vrot.slane %v996, 6
  %v1156 = vmul.f32 %v1136, %v1154
  %v1157 = vmul.f32 %v1121, %v1152
  %v1158 = vadd.f32 %v1156, %v1157
  %v1159 = vtanh.pop %v1158
  %v1160 = vmul.f32 %v1151, %v1159
  %v1162 = vrot.slane %v1160, 2
  %1164 = vmatpush.msra.mxu0 %v203
  %1165 = vmatpush.msra.mxu0 %v199
  %1166 = vmatpush.msra.mxu0 %v195
  %1167 = vmatpush.msra.mxu0 %v191
  %1168 = vmatpush.msra.mxu0 %v187
  %1169 = vmatpush.msra.mxu0 %v183
  %1170 = vmatpush.msra.mxu0 %v179
  %1171 = vmatpush.msra.mxu0 %v175
  %1172 = vmatpush.msra.mxu0 %v171
  %1173 = vmatpush.msra.mxu0 %v167
  %1174 = vmatpush.msra.mxu0 %v163
  %1175 = vmatpush.msra.mxu0 %v159
  %1176 = vmatpush.msra.mxu0 %v155
  %1177 = vmatpush.msra.mxu0 %v151
  %1178 = vmatpush.msra.mxu0 %v147
  %1179 = vmatpush.msra.mxu0 %v143
  %1180 = vmatmul.f32.gmra.mxu0 %v1162
  %v1181 = vpop.f32.mrf.mxu0
  %v1182 = vadd.f32 0.0, %v1181
  %1183 = vdwg.mxu0
  %1184 = vmatpush.msra.mxu0 %v204
  %1185 = vmatpush.msra.mxu0 %v200
  %1186 = vmatpush.msra.mxu0 %v196
  %1187 = vmatpush.msra.mxu0 %v192
  %1188 = vmatpush.msra.mxu0 %v188
  %1189 = vmatpush.msra.mxu0 %v184
  %1190 = vmatpush.msra.mxu0 %v180
  %1191 = vmatpush.msra.mxu0 %v176
  %1192 = vmatpush.msra.mxu0 %v172
  %1193 = vmatpush.msra.mxu0 %v168
  %1194 = vmatpush.msra.mxu0 %v164
  %1195 = vmatpush.msra.mxu0 %v160
  %1196 = vmatpush.msra.mxu0 %v156
  %1197 = vmatpush.msra.mxu0 %v152
  %1198 = vmatpush.msra.mxu0 %v148
  %1199 = vmatpush.msra.mxu0 %v144
  %1200 = vmatmul.f32.gmra.mxu0 %v1162
  %v1201 = vpop.f32.mrf.mxu0
  %v1202 = vadd.f32 0.0, %v1201
  %1203 = vdwg.mxu0
  %1204 = vmatpush.msra.mxu0 %v205
  %1205 = vmatpush.msra.mxu0 %v201
  %1206 = vmatpush.msra.mxu0 %v197
  %1207 = vmatpush.msra.mxu0 %v193
  %1208 = vmatpush.msra.mxu0 %v189
  %1209 = vmatpush.msra.mxu0 %v185
  %1210 = vmatpush.msra.mxu0 %v181
  %1211 = vmatpush.msra.mxu0 %v177
  %1212 = vmatpush.msra.mxu0 %v173
  %1213 = vmatpush.msra.mxu0 %v169
  %1214 = vmatpush.msra.mxu0 %v165
  %1215 = vmatpush.msra.mxu0 %v161
  %1216 = vmatpush.msra.mxu0 %v157
  %1217 = vmatpush.msra.mxu0 %v153
  %1218 = vmatpush.msra.mxu0 %v149
  %1219 = vmatpush.msra.mxu0 %v145
  %1220 = vmatmul.f32.gmra.mxu0 %v1162
  %v1221 = vpop.f32.mrf.mxu0
  %v1222 = vadd.f32 0.0, %v1221
  %1223 = vdwg.mxu0
  %1224 = vmatpush.msra.mxu0 %v206
  %1225 = vmatpush.msra.mxu0 %v202
  %1226 = vmatpush.msra.mxu0 %v198
  %1227 = vmatpush.msra.mxu0 %v194
  %1228 = vmatpush.msra.mxu0 %v190
  %1229 = vmatpush.msra.mxu0 %v186
  %1230 = vmatpush.msra.mxu0 %v182
  %1231 = vmatpush.msra.mxu0 %v178
  %1232 = vmatpush.msra.mxu0 %v174
  %1233 = vmatpush.msra.mxu0 %v170
  %1234 = vmatpush.msra.mxu0 %v166
  %1235 = vmatpush.msra.mxu0 %v162
  %1236 = vmatpush.msra.mxu0 %v158
  %1237 = vmatpush.msra.mxu0 %v154
  %1238 = vmatpush.msra.mxu0 %v150
  %1239 = vmatpush.msra.mxu0 %v146
  %1240 = vmatmul.f32.gmra.mxu0 %v1162
  %v1241 = vpop.f32.mrf.mxu0
  %v1242 = vadd.f32 0.0, %v1241
  %1243 = vdwg.mxu0
  %v1248 = vrot.slane %v1182, 4
  %v1249 = vrot.slane %v1202, 4
  %v1250 = vrot.slane %v1222, 4
  %v1251 = vrot.slane %v1242, 4
  %v1256 = vadd.f32 %v72, %v1248
  %v1257 = vadd.f32 %v95, %v1249
  %v1258 = vadd.f32 %v118, %v1250
  %v1259 = vadd.f32 %v141, %v1251
  %v1260 = vxor.u32 %v1256, 2147483648
  %v1261 = vxor.u32 %v1257, 2147483648
  %v1262 = vxor.u32 %v1258, 2147483648
  %v1263 = vmul.f32 %v1260, 1.442695
  %v1264 = vpow.pop %v1263
  %v1265 = vmul.f32 %v1261, 1.442695
  %v1266 = vpow.pop %v1265
  %v1267 = vmul.f32 %v1262, 1.442695
  %v1268 = vpow.pop %v1267
  %v1269 = vadd.f32 %v1264, 1.0
  %v1270 = vadd.f32 %v1266, 1.0
  %v1271 = vadd.f32 %v1268, 1.0
  %v1272 = vrcp.pop %v1269
  %v1273 = vmul.f32 %v1269, %v1272
  %v1274 = vsub.f32 1.0, %v1273
  %v1275 = vmul.f32 %v1272, %v1274
  %v1276 = vadd.f32 %v1272, %v1275
  %vm1277 = vweird.f32 %v1269
  %vm1278 = vweird.f32 %v1272
  %vm1279 = vmor %vm1277, %vm1278
  %v1280 = vsel %vm1279, %v1272, %v1276
  %v1281 = vand.u32 2147483647, %v1269
  %vm1282 = vcmp.eq.f32.partialorder %v1281, 8.507059e+37
  %v1283 = vand.u32 %v1269, 2147483648
  %v1284 = vor.u32 1.1754944e-38, %v1283
  %v1285 = vsel %vm1282, %v1284, %v1280
  %v1286 = vmul.f32 1.0, %v1285
  %v1287 = vrcp.pop %v1270
  %v1288 = vmul.f32 %v1270, %v1287
  %v1289 = vsub.f32 1.0, %v1288
  %v1290 = vmul.f32 %v1287, %v1289
  %v1291 = vadd.f32 %v1287, %v1290
  %vm1292 = vweird.f32 %v1270
  %vm1293 = vweird.f32 %v1287
  %vm1294 = vmor %vm1292, %vm1293
  %v1295 = vsel %vm1294, %v1287, %v1291
  %v1296 = vand.u32 2147483647, %v1270
  %vm1297 = vcmp.eq.f32.partialorder %v1296, 8.507059e+37
  %v1298 = vand.u32 %v1270, 2147483648
  %v1299 = vor.u32 1.1754944e-38, %v1298
  %v1300 = vsel %vm1297, %v1299, %v1295
  %v1301 = vmul.f32 1.0, %v1300
  %v1302 = vrcp.pop %v1271
  %v1303 = vmul.f32 %v1271, %v1302
  %v1304 = vsub.f32 1.0, %v1303
  %v1305 = vmul.f32 %v1302, %v1304
  %v1306 = vadd.f32 %v1302, %v1305
  %vm1307 = vweird.f32 %v1271
  %vm1308 = vweird.f32 %v1302
  %vm1309 = vmor %vm1307, %vm1308
  %v1310 = vsel %vm1309, %v1302, %v1306
  %v1311 = vand.u32 2147483647, %v1271
  %vm1312 = vcmp.eq.f32.partialorder %v1311, 8.507059e+37
  %v1313 = vand.u32 %v1271, 2147483648
  %v1314 = vor.u32 1.1754944e-38, %v1313
  %v1315 = vsel %vm1312, %v1314, %v1310
  %v1316 = vmul.f32 1.0, %v1315
  %v1317 = vtanh.pop %v1259
  %v1319 = vrot.slane %v1158, 6
  %v1321 = vmul.f32 %v1301, %v1319
  %v1322 = vmul.f32 %v1286, %v1317
  %v1323 = vadd.f32 %v1321, %v1322
  %v1324 = vtanh.pop %v1323
  %v1325 = vmul.f32 %v1316, %v1324
  %v1327 = vrot.slane %v1325, 4
  %1329 = vmatpush.msra.mxu0 %v203
  %1330 = vmatpush.msra.mxu0 %v199
  %1331 = vmatpush.msra.mxu0 %v195
  %1332 = vmatpush.msra.mxu0 %v191
  %1333 = vmatpush.msra.mxu0 %v187
  %1334 = vmatpush.msra.mxu0 %v183
  %1335 = vmatpush.msra.mxu0 %v179
  %1336 = vmatpush.msra.mxu0 %v175
  %1337 = vmatpush.msra.mxu0 %v171
  %1338 = vmatpush.msra.mxu0 %v167
  %1339 = vmatpush.msra.mxu0 %v163
  %1340 = vmatpush.msra.mxu0 %v159
  %1341 = vmatpush.msra.mxu0 %v155
  %1342 = vmatpush.msra.mxu0 %v151
  %1343 = vmatpush.msra.mxu0 %v147
  %1344 = vmatpush.msra.mxu0 %v143
  %1345 = vmatmul.f32.gmra.mxu0 %v1327
  %v1346 = vpop.f32.mrf.mxu0
  %v1347 = vadd.f32 0.0, %v1346
  %1348 = vdwg.mxu0
  %1349 = vmatpush.msra.mxu0 %v204
  %1350 = vmatpush.msra.mxu0 %v200
  %1351 = vmatpush.msra.mxu0 %v196
  %1352 = vmatpush.msra.mxu0 %v192
  %1353 = vmatpush.msra.mxu0 %v188
  %1354 = vmatpush.msra.mxu0 %v184
  %1355 = vmatpush.msra.mxu0 %v180
  %1356 = vmatpush.msra.mxu0 %v176
  %1357 = vmatpush.msra.mxu0 %v172
  %1358 = vmatpush.msra.mxu0 %v168
  %1359 = vmatpush.msra.mxu0 %v164
  %1360 = vmatpush.msra.mxu0 %v160
  %1361 = vmatpush.msra.mxu0 %v156
  %1362 = vmatpush.msra.mxu0 %v152
  %1363 = vmatpush.msra.mxu0 %v148
  %1364 = vmatpush.msra.mxu0 %v144
  %1365 = vmatmul.f32.gmra.mxu0 %v1327
  %v1366 = vpop.f32.mrf.mxu0
  %v1367 = vadd.f32 0.0, %v1366
  %1368 = vdwg.mxu0
  %1369 = vmatpush.msra.mxu0 %v205
  %1370 = vmatpush.msra.mxu0 %v201
  %1371 = vmatpush.msra.mxu0 %v197
  %1372 = vmatpush.msra.mxu0 %v193
  %1373 = vmatpush.msra.mxu0 %v189
  %1374 = vmatpush.msra.mxu0 %v185
  %1375 = vmatpush.msra.mxu0 %v181
  %1376 = vmatpush.msra.mxu0 %v177
  %1377 = vmatpush.msra.mxu0 %v173
  %1378 = vmatpush.msra.mxu0 %v169
  %1379 = vmatpush.msra.mxu0 %v165
  %1380 = vmatpush.msra.mxu0 %v161
  %1381 = vmatpush.msra.mxu0 %v157
  %1382 = vmatpush.msra.mxu0 %v153
  %1383 = vmatpush.msra.mxu0 %v149
  %1384 = vmatpush.msra.mxu0 %v145
  %1385 = vmatmul.f32.gmra.mxu0 %v1327
  %v1386 = vpop.f32.mrf.mxu0
  %v1387 = vadd.f32 0.0, %v1386
  %1388 = vdwg.mxu0
  %1389 = vmatpush.msra.mxu0 %v206
  %1390 = vmatpush.msra.mxu0 %v202
  %1391 = vmatpush.msra.mxu0 %v198
  %1392 = vmatpush.msra.mxu0 %v194
  %1393 = vmatpush.msra.mxu0 %v190
  %1394 = vmatpush.msra.mxu0 %v186
  %1395 = vmatpush.msra.mxu0 %v182
  %1396 = vmatpush.msra.mxu0 %v178
  %1397 = vmatpush.msra.mxu0 %v174
  %1398 = vmatpush.msra.mxu0 %v170
  %1399 = vmatpush.msra.mxu0 %v166
  %1400 = vmatpush.msra.mxu0 %v162
  %1401 = vmatpush.msra.mxu0 %v158
  %1402 = vmatpush.msra.mxu0 %v154
  %1403 = vmatpush.msra.mxu0 %v150
  %1404 = vmatpush.msra.mxu0 %v146
  %1405 = vmatmul.f32.gmra.mxu0 %v1327
  %v1406 = vpop.f32.mrf.mxu0
  %v1407 = vadd.f32 0.0, %v1406
  %1408 = vdwg.mxu0
  %v1413 = vrot.slane %v1347, 2
  %v1414 = vrot.slane %v1367, 2
  %v1415 = vrot.slane %v1387, 2
  %v1416 = vrot.slane %v1407, 2
  %v1421 = vadd.f32 %v72, %v1413
  %v1422 = vadd.f32 %v95, %v1414
  %v1423 = vadd.f32 %v118, %v1415
  %v1424 = vadd.f32 %v141, %v1416
  %v1425 = vxor.u32 %v1421, 2147483648
  %v1426 = vxor.u32 %v1422, 2147483648
  %v1427 = vxor.u32 %v1423, 2147483648
  %v1428 = vmul.f32 %v1425, 1.442695
  %v1429 = vpow.pop %v1428
  %v1430 = vmul.f32 %v1426, 1.442695
  %v1431 = vpow.pop %v1430
  %v1432 = vmul.f32 %v1427, 1.442695
  %v1433 = vpow.pop %v1432
  %v1434 = vadd.f32 %v1429, 1.0
  %v1435 = vadd.f32 %v1431, 1.0
  %v1436 = vadd.f32 %v1433, 1.0
  %v1437 = vrcp.pop %v1434
  %v1438 = vmul.f32 %v1434, %v1437
  %v1439 = vsub.f32 1.0, %v1438
  %v1440 = vmul.f32 %v1437, %v1439
  %v1441 = vadd.f32 %v1437, %v1440
  %vm1442 = vweird.f32 %v1434
  %vm1443 = vweird.f32 %v1437
  %vm1444 = vmor %vm1442, %vm1443
  %v1445 = vsel %vm1444, %v1437, %v1441
  %v1446 = vand.u32 2147483647, %v1434
  %vm1447 = vcmp.eq.f32.partialorder %v1446, 8.507059e+37
  %v1448 = vand.u32 %v1434, 2147483648
  %v1449 = vor.u32 1.1754944e-38, %v1448
  %v1450 = vsel %vm1447, %v1449, %v1445
  %v1451 = vmul.f32 1.0, %v1450
  %v1452 = vrcp.pop %v1435
  %v1453 = vmul.f32 %v1435, %v1452
  %v1454 = vsub.f32 1.0, %v1453
  %v1455 = vmul.f32 %v1452, %v1454
  %v1456 = vadd.f32 %v1452, %v1455
  %vm1457 = vweird.f32 %v1435
  %vm1458 = vweird.f32 %v1452
  %vm1459 = vmor %vm1457, %vm1458
  %v1460 = vsel %vm1459, %v1452, %v1456
  %v1461 = vand.u32 2147483647, %v1435
  %vm1462 = vcmp.eq.f32.partialorder %v1461, 8.507059e+37
  %v1463 = vand.u32 %v1435, 2147483648
  %v1464 = vor.u32 1.1754944e-38, %v1463
  %v1465 = vsel %vm1462, %v1464, %v1460
  %v1466 = vmul.f32 1.0, %v1465
  %v1467 = vrcp.pop %v1436
  %v1468 = vmul.f32 %v1436, %v1467
  %v1469 = vsub.f32 1.0, %v1468
  %v1470 = vmul.f32 %v1467, %v1469
  %v1471 = vadd.f32 %v1467, %v1470
  %vm1472 = vweird.f32 %v1436
  %vm1473 = vweird.f32 %v1467
  %vm1474 = vmor %vm1472, %vm1473
  %v1475 = vsel %vm1474, %v1467, %v1471
  %v1476 = vand.u32 2147483647, %v1436
  %vm1477 = vcmp.eq.f32.partialorder %v1476, 8.507059e+37
  %v1478 = vand.u32 %v1436, 2147483648
  %v1479 = vor.u32 1.1754944e-38, %v1478
  %v1480 = vsel %vm1477, %v1479, %v1475
  %v1481 = vmul.f32 1.0, %v1480
  %v1482 = vtanh.pop %v1424
  %v1484 = vrot.slane %v1323, 6
  %v1486 = vmul.f32 %v1466, %v1484
  %v1487 = vmul.f32 %v1451, %v1482
  %v1488 = vadd.f32 %v1486, %v1487
  %v1489 = vtanh.pop %v1488
  %v1490 = vmul.f32 %v1481, %v1489
  %v1491 = vld [vmem:[%s4] sm:$0xff]
  %v1492 = vld [vmem:[%s4 + $0x8] sm:$0xff]
  %v1493 = vld [vmem:[%s4 + $0x10] sm:$0xff]
  %v1494 = vld [vmem:[%s4 + $0x18] sm:$0xff]
  %v1495 = vld [vmem:[%s4 + $0x20] sm:$0xff]
  %v1496 = vld [vmem:[%s4 + $0x28] sm:$0xff]
  %v1497 = vld [vmem:[%s4 + $0x30] sm:$0xff]
  %v1498 = vld [vmem:[%s4 + $0x38] sm:$0xff]
  %v1499 = vld [vmem:[%s4 + $0x40] sm:$0xff]
  %v1500 = vld [vmem:[%s4 + $0x48] sm:$0xff]
  %v1501 = vld [vmem:[%s4 + $0x50] sm:$0xff]
  %v1502 = vld [vmem:[%s4 + $0x58] sm:$0xff]
  %v1503 = vld [vmem:[%s4 + $0x60] sm:$0xff]
  %v1504 = vld [vmem:[%s4 + $0x68] sm:$0xff]
  %v1505 = vld [vmem:[%s4 + $0x70] sm:$0xff]
  %v1506 = vld [vmem:[%s4 + $0x78] sm:$0xff]
  %s1507 = sld [smem:[#allocation2]]
  %v1508 = vstv %s1507
  %v1510 = vrot.slane %v1490, 6
  %1512 = vmatpush.msra.mxu0 %v1506
  %1513 = vmatpush.msra.mxu0 %v1505
  %1514 = vmatpush.msra.mxu0 %v1504
  %1515 = vmatpush.msra.mxu0 %v1503
  %1516 = vmatpush.msra.mxu0 %v1502
  %1517 = vmatpush.msra.mxu0 %v1501
  %1518 = vmatpush.msra.mxu0 %v1500
  %1519 = vmatpush.msra.mxu0 %v1499
  %1520 = vmatpush.msra.mxu0 %v1498
  %1521 = vmatpush.msra.mxu0 %v1497
  %1522 = vmatpush.msra.mxu0 %v1496
  %1523 = vmatpush.msra.mxu0 %v1495
  %1524 = vmatpush.msra.mxu0 %v1494
  %1525 = vmatpush.msra.mxu0 %v1493
  %1526 = vmatpush.msra.mxu0 %v1492
  %1527 = vmatpush.msra.mxu0 %v1491
  %1528 = vmatmul.f32.gmra.mxu0 %v1510
  %v1529 = vpop.f32.mrf.mxu0
  %v1530 = vadd.f32 %v1508, %v1529
  %1531 = vdwg.mxu0
  %vm1532 = vcmask 1024
  %1533 = vst.msk [vmem:[%s6] sm:$0x3] %vm1532, %v1530
  // Predicated region
  $region26: #{lstm_model_forward.1} parent=0 // pred_check
    _
  $region27: #{lstm_model_forward.1} parent=0 // pred_check_branch
    %1535 = sbr.rel (0) target = $region29
  $region28: #{lstm_model_forward.1} parent=0 // pred_region
    _
  $region29: #{lstm_model_forward.1} parent=0 // pred_fallthru
    _
  // Predicated region
  $region30: #{lstm_model_forward.1} parent=0 // pred_check
    _
  $region31: #{lstm_model_forward.1} parent=0 // pred_check_branch
    %1537 = sbr.rel (0) target = $region33
  $region32: #{lstm_model_forward.1} parent=0 // pred_region
    _
  $region33: #{lstm_model_forward.1} parent=0 // pred_fallthru
    _

</llo_original>
